<compile_context>
chip_gen: v7x
topology: tpu7x:2x2x1
jax: 0.10.0
libtpu: 0.0.40
codegen_flags: <defaults>
</compile_context>

<pallas_src>
import functools
import math

import jax
import jax.numpy as jnp
import numpy as np
from jax.experimental import pallas as pl
from jax.experimental.pallas import tpu as pltpu

# Model hyper-parameters (SAttention(d_model, nhead, dropout)).
D_MODEL = 32
NHEAD = 4
HEAD_DIM = D_MODEL // NHEAD
TEMPERATURE = math.sqrt(D_MODEL / NHEAD)
EPS = 1e-5
NEG_INF = -1e30

# Example input shape: x is (S0, S1, D_MODEL); attention runs over S0,
# batched over S1 (this matches the transpose(0, 1) in the PyTorch forward).
S0 = 8
S1 = 4


def _layernorm(x, g, b):
    mu = jnp.mean(x, axis=-1, keepdims=True)
    var = jnp.mean((x - mu) ** 2, axis=-1, keepdims=True)
    return (x - mu) * jax.lax.rsqrt(var + EPS) * g + b


def sattention_kernel(x_ref, w_ref, vec_ref, o_ref, *, s1, chunk, n_inst, nhead):
    """Whole-problem kernel (no grid).

    x_ref:   (N, D) f32, N = n_inst * S0 * S1 (all instances + attention
             batches folded into rows; row r belongs to instance r // chunk
             and attention batch r % s1).
    w_ref:   (D, 5D) bf16 packed weights [Wq^T|Wk^T|Wv^T|Wf1^T|Wf2^T].
    vec_ref: (6, D) f32 packed vectors  [g1; b1; g2; b2; bf1; bf2].
    """
    n, d = x_ref.shape
    head_dim = d // nhead
    inv_temp = 1.0 / math.sqrt(d / nhead)

    x = x_ref[...].astype(jnp.float32)
    w = w_ref[...]                       # bf16 (d, 5d)
    vecs = vec_ref[...]                  # f32  (6, d)
    g1, b1 = vecs[0:1, :], vecs[1:2, :]
    g2, b2 = vecs[2:3, :], vecs[3:4, :]
    bf1, bf2 = vecs[4:5, :], vecs[5:6, :]

    # norm1 (f32 elementwise).
    xn = _layernorm(x, g1, b1)

    # Fused Q/K/V projection: bf16 operands, f32 accumulation.
    qkv = jnp.dot(xn.astype(jnp.bfloat16), w[:, 0:3 * d],
                  preferred_element_type=jnp.float32)
    q = qkv[:, 0:d].astype(jnp.bfloat16)
    k = qkv[:, d:2 * d].astype(jnp.bfloat16)
    v = qkv[:, 2 * d:3 * d].astype(jnp.bfloat16)

    # Block-diagonal attention mask: row r may attend to row c iff they share
    # the attention batch (r % s1 == c % s1) and, when several independent
    # instances are folded in, the same instance (r // chunk == c // chunk).
    ri = jax.lax.broadcasted_iota(jnp.int32, (n, n), 0)
    ci = jax.lax.broadcasted_iota(jnp.int32, (n, n), 1)
    diff = ri - ci
    if (s1 & (s1 - 1)) == 0:             # s1 is a power of two
        bmask = (diff & (s1 - 1)) == 0
    else:
        bmask = (diff % s1) == 0
    if n_inst > 1:
        bmask = bmask & ((ri // chunk) == (ci // chunk))

    # Lane index, used to zero V outside the current head's lanes so each
    # head's contribution accumulates into a full-width f32 accumulator.
    lane = jax.lax.broadcasted_iota(jnp.int32, (n, d), 1)

    acc = jnp.zeros((n, d), jnp.float32)
    for i in range(nhead):
        lo = i * head_dim
        hi = d if i == nhead - 1 else (i + 1) * head_dim
        # Scores: contract the head slices' last dims (trans_b form, no k.T).
        s = jax.lax.dot_general(
            q[:, lo:hi], k[:, lo:hi],
            dimension_numbers=(((1,), (1,)), ((), ())),
            preferred_element_type=jnp.float32) * inv_temp
        s = jnp.where(bmask, s, NEG_INF)
        s = s - jnp.max(s, axis=-1, keepdims=True)
        p = jnp.exp(s)
        p = p * pl.reciprocal(jnp.sum(p, axis=-1, keepdims=True), approx=True)
        # attn_dropout[i]: identity in eval mode.
        vh = jnp.where((lane >= lo) & (lane < hi), v, jnp.zeros_like(v))
        acc = acc + jnp.dot(p.astype(jnp.bfloat16), vh,
                            preferred_element_type=jnp.float32)

    # Residual onto the post-norm1 activations (as in the PyTorch module),
    # then norm2 (f32).
    xt = _layernorm(xn + acc, g2, b2)

    # FFN: Linear -> ReLU -> (Dropout=id) -> Linear -> (Dropout=id).
    h = jnp.maximum(
        jnp.dot(xt.astype(jnp.bfloat16), w[:, 3 * d:4 * d],
                preferred_element_type=jnp.float32) + bf1, 0.0)
    ffn = (jnp.dot(h.astype(jnp.bfloat16), w[:, 4 * d:5 * d],
                   preferred_element_type=jnp.float32) + bf2)

    o_ref[...] = (xt + ffn).astype(o_ref.dtype)


def sattention_forward(x, params):
    """x: (..., S0, S1, D).  Leading dims are independent instances that are
    folded into the matmul row dimension of a single pallas_call (weights are
    DMA'd and launch cost paid once for the whole batch)."""
    *lead, s0, s1, d = x.shape
    assert d == D_MODEL
    n_inst = int(np.prod(lead)) if lead else 1
    chunk = s0 * s1
    n = n_inst * chunk
    x2 = x.reshape(n, d)                 # free reshape, no transposes

    # Packed operands (in a real deployment pack once, outside the step fn).
    w_slab = jnp.concatenate(
        [params["wq"].T, params["wk"].T, params["wv"].T,
         params["wf1"].T, params["wf2"].T], axis=1).astype(jnp.bfloat16)
    vec_slab = jnp.stack(
        [params["g1"], params["b1"], params["g2"], params["b2"],
         params["bf1"], params["bf2"]], axis=0).astype(jnp.float32)

    kernel = functools.partial(sattention_kernel, s1=s1, chunk=chunk,
                               n_inst=n_inst, nhead=NHEAD)
    vmem = pl.BlockSpec(memory_space=pltpu.MemorySpace.VMEM)

    out2 = pl.pallas_call(
        kernel,
        out_shape=jax.ShapeDtypeStruct((n, d), x.dtype),
        in_specs=[vmem, vmem, vmem],
        out_specs=vmem,
    )(x2, w_slab, vec_slab)

    return out2.reshape(x.shape)


def sattention_ref(x, params):
    """Pure-JAX mirror of the PyTorch forward (eval mode), f32 throughout."""
    def ln(y, g, b):
        mu = y.mean(-1, keepdims=True)
        var = ((y - mu) ** 2).mean(-1, keepdims=True)
        return (y - mu) / jnp.sqrt(var + EPS) * g + b

    xn = ln(x, params["g1"], params["b1"])
    q = (xn @ params["wq"].T).transpose(1, 0, 2)
    k = (xn @ params["wk"].T).transpose(1, 0, 2)
    v = (xn @ params["wv"].T).transpose(1, 0, 2)
    outs = []
    for i in range(NHEAD):
        lo = i * HEAD_DIM
        hi = D_MODEL if i == NHEAD - 1 else (i + 1) * HEAD_DIM
        qh, kh, vh = q[..., lo:hi], k[..., lo:hi], v[..., lo:hi]
        a = jax.nn.softmax(qh @ kh.transpose(0, 2, 1) / TEMPERATURE, axis=-1)
        outs.append((a @ vh).transpose(1, 0, 2))
    att = jnp.concatenate(outs, axis=-1)
    xt = ln(xn + att, params["g2"], params["b2"])
    h = jnp.maximum(xt @ params["wf1"].T + params["bf1"], 0.0)
    ffn = h @ params["wf2"].T + params["bf2"]
    return xt + ffn


def make_params(key):
    ks = jax.random.split(key, 10)
    d = D_MODEL
    scale = 1.0 / math.sqrt(d)
    return {
        "wq": jax.random.uniform(ks[0], (d, d), jnp.float32, -scale, scale),
        "wk": jax.random.uniform(ks[1], (d, d), jnp.float32, -scale, scale),
        "wv": jax.random.uniform(ks[2], (d, d), jnp.float32, -scale, scale),
        "g1": 1.0 + 0.1 * jax.random.normal(ks[3], (d,), jnp.float32),
        "b1": 0.1 * jax.random.normal(ks[4], (d,), jnp.float32),
        "g2": 1.0 + 0.1 * jax.random.normal(ks[5], (d,), jnp.float32),
        "b2": 0.1 * jax.random.normal(ks[6], (d,), jnp.float32),
        "wf1": jax.random.uniform(ks[7], (d, d), jnp.float32, -scale, scale),
        "bf1": 0.1 * jax.random.normal(ks[8], (d,), jnp.float32),
        "wf2": jax.random.uniform(ks[9], (d, d), jnp.float32, -scale, scale),
        "bf2": jnp.zeros((d,), jnp.float32),
    }


if __name__ == "__main__":
    key = jax.random.PRNGKey(0)
    kx, kp, kb = jax.random.split(key, 3)
    params = make_params(kp)

    # Tolerance covers bf16 MXU operands (f32 accumulation) plus the
    # approximate EUP reciprocal in the softmax denominator.
    RTOL = ATOL = 5e-2

    # 1) Single-instance forward, exactly the module's signature: x (S0,S1,D).
    x = jax.random.normal(kx, (S0, S1, D_MODEL), jnp.float32)
    out = jax.jit(sattention_forward)(x, params)
    out = jax.block_until_ready(out)
    ref = sattention_ref(x, params)
    np.testing.assert_allclose(np.asarray(out), np.asarray(ref),
                               rtol=RTOL, atol=ATOL)

    # 2) Batched: 3 independent instances folded into one pallas_call
    #    (amortizes launch + weight DMA; fills the MXU M dimension).
    xb = jax.random.normal(kb, (3, S0, S1, D_MODEL), jnp.float32)
    outb = jax.jit(sattention_forward)(xb, params)
    outb = jax.block_until_ready(outb)
    refb = jax.vmap(lambda xi: sattention_ref(xi, params))(xb)
    np.testing.assert_allclose(np.asarray(outb), np.asarray(refb),
                               rtol=RTOL, atol=ATOL)

    print("KERNEL_OK")
</pallas_src>

<mosaic_0001>
module attributes {stable_mosaic.version = 11 : i64} {
  func.func @sattention_kernel(%arg0: memref<32x32xf32, #tpu.memory_space<vmem>>, %arg1: memref<32x160xbf16, #tpu.memory_space<vmem>>, %arg2: memref<6x32xf32, #tpu.memory_space<vmem>>, %arg3: memref<32x32xf32, #tpu.memory_space<vmem>>) attributes {dimension_semantics = [], scalar_prefetch = 0 : i64, scratch_operands = 0 : i64, tpu.core_type = #tpu.core_type<tc>} {
    %c0 = arith.constant 0 : index
    %c0_0 = arith.constant 0 : index
    %0 = vector.load %arg0[%c0, %c0_0] : memref<32x32xf32, #tpu.memory_space<vmem>>, vector<32x32xf32>
    %c0_1 = arith.constant 0 : index
    %c0_2 = arith.constant 0 : index
    %1 = vector.load %arg1[%c0_1, %c0_2] : memref<32x160xbf16, #tpu.memory_space<vmem>>, vector<32x160xbf16>
    %c0_3 = arith.constant 0 : index
    %c0_4 = arith.constant 0 : index
    %2 = vector.load %arg2[%c0_3, %c0_4] : memref<6x32xf32, #tpu.memory_space<vmem>>, vector<6x32xf32>
    %3 = vector.extract_strided_slice %2 {offsets = [0, 0], sizes = [1, 32], strides = [1, 1]} : vector<6x32xf32> to vector<1x32xf32>
    %4 = vector.extract_strided_slice %2 {offsets = [1, 0], sizes = [1, 32], strides = [1, 1]} : vector<6x32xf32> to vector<1x32xf32>
    %5 = vector.extract_strided_slice %2 {offsets = [2, 0], sizes = [1, 32], strides = [1, 1]} : vector<6x32xf32> to vector<1x32xf32>
    %6 = vector.extract_strided_slice %2 {offsets = [3, 0], sizes = [1, 32], strides = [1, 1]} : vector<6x32xf32> to vector<1x32xf32>
    %7 = vector.extract_strided_slice %2 {offsets = [4, 0], sizes = [1, 32], strides = [1, 1]} : vector<6x32xf32> to vector<1x32xf32>
    %8 = vector.extract_strided_slice %2 {offsets = [5, 0], sizes = [1, 32], strides = [1, 1]} : vector<6x32xf32> to vector<1x32xf32>
    %cst = arith.constant dense<0.000000e+00> : vector<32xf32>
    %9 = vector.multi_reduction <add>, %0, %cst [1] : vector<32x32xf32> to vector<32xf32>
    %10 = vector.shape_cast %9 : vector<32xf32> to vector<32x1xf32>
    %cst_5 = arith.constant 3.200000e+01 : f32
    %11 = vector.broadcast %cst_5 : f32 to vector<32x1xf32>
    %12 = arith.divf %10, %11 : vector<32x1xf32>
    %13 = vector.broadcast %12 : vector<32x1xf32> to vector<32x32xf32>
    %14 = arith.subf %0, %13 : vector<32x32xf32>
    %15 = arith.mulf %14, %14 : vector<32x32xf32>
    %cst_6 = arith.constant dense<0.000000e+00> : vector<32xf32>
    %16 = vector.multi_reduction <add>, %15, %cst_6 [1] : vector<32x32xf32> to vector<32xf32>
    %17 = vector.shape_cast %16 : vector<32xf32> to vector<32x1xf32>
    %cst_7 = arith.constant 3.200000e+01 : f32
    %18 = vector.broadcast %cst_7 : f32 to vector<32x1xf32>
    %19 = arith.divf %17, %18 : vector<32x1xf32>
    %20 = vector.broadcast %12 : vector<32x1xf32> to vector<32x32xf32>
    %21 = arith.subf %0, %20 : vector<32x32xf32>
    %cst_8 = arith.constant 9.99999974E-6 : f32
    %22 = vector.broadcast %cst_8 : f32 to vector<32x1xf32>
    %23 = arith.addf %19, %22 : vector<32x1xf32>
    %24 = math.rsqrt %23 : vector<32x1xf32>
    %25 = vector.broadcast %24 : vector<32x1xf32> to vector<32x32xf32>
    %26 = arith.mulf %21, %25 : vector<32x32xf32>
    %27 = vector.broadcast %3 : vector<1x32xf32> to vector<32x32xf32>
    %28 = arith.mulf %26, %27 : vector<32x32xf32>
    %29 = vector.broadcast %4 : vector<1x32xf32> to vector<32x32xf32>
    %30 = arith.addf %28, %29 : vector<32x32xf32>
    %31 = arith.truncf %30 : vector<32x32xf32> to vector<32x32xbf16>
    %32 = vector.extract_strided_slice %1 {offsets = [0, 0], sizes = [32, 96], strides = [1, 1]} : vector<32x160xbf16> to vector<32x96xbf16>
    %cst_9 = arith.constant dense<0.000000e+00> : vector<32x96xf32>
    %33 = tpu.matmul %31, %32, %cst_9 {dimension_numbers = #tpu.dot_dimension_numbers<[1], [0], [0], [1], [0, 0, 1, 1], [], []>} : vector<32x32xbf16>, vector<32x96xbf16>, vector<32x96xf32> -> vector<32x96xf32>
    %34 = vector.extract_strided_slice %33 {offsets = [0, 0], sizes = [32, 32], strides = [1, 1]} : vector<32x96xf32> to vector<32x32xf32>
    %35 = arith.truncf %34 : vector<32x32xf32> to vector<32x32xbf16>
    %36 = vector.extract_strided_slice %33 {offsets = [0, 32], sizes = [32, 32], strides = [1, 1]} : vector<32x96xf32> to vector<32x32xf32>
    %37 = arith.truncf %36 : vector<32x32xf32> to vector<32x32xbf16>
    %38 = vector.extract_strided_slice %33 {offsets = [0, 64], sizes = [32, 32], strides = [1, 1]} : vector<32x96xf32> to vector<32x32xf32>
    %39 = arith.truncf %38 : vector<32x32xf32> to vector<32x32xbf16>
    %40 = tpu.iota {dimensions = array<i32: 0>} : vector<32x32xi32>
    %41 = tpu.iota {dimensions = array<i32: 1>} : vector<32x32xi32>
    %42 = arith.subi %40, %41 : vector<32x32xi32>
    %c3_i32 = arith.constant 3 : i32
    %43 = vector.broadcast %c3_i32 : i32 to vector<32x32xi32>
    %44 = arith.andi %42, %43 : vector<32x32xi32>
    %c0_i32 = arith.constant 0 : i32
    %45 = vector.broadcast %c0_i32 : i32 to vector<32x32xi32>
    %46 = arith.cmpi eq, %44, %45 : vector<32x32xi32>
    %47 = tpu.iota {dimensions = array<i32: 1>} : vector<32x32xi32>
    %cst_10 = arith.constant 0.000000e+00 : f32
    %48 = vector.broadcast %cst_10 : f32 to vector<32x32xf32>
    %49 = vector.extract_strided_slice %35 {offsets = [0, 0], sizes = [32, 8], strides = [1, 1]} : vector<32x32xbf16> to vector<32x8xbf16>
    %50 = vector.extract_strided_slice %37 {offsets = [0, 0], sizes = [32, 8], strides = [1, 1]} : vector<32x32xbf16> to vector<32x8xbf16>
    %cst_11 = arith.constant dense<0.000000e+00> : vector<32x32xf32>
    %51 = tpu.matmul %49, %50, %cst_11 {dimension_numbers = #tpu.dot_dimension_numbers<[1], [1], [0], [0], [0, 0, 1, 0], [], []>} : vector<32x8xbf16>, vector<32x8xbf16>, vector<32x32xf32> -> vector<32x32xf32>
    %cst_12 = arith.constant 0.353553385 : f32
    %52 = vector.broadcast %cst_12 : f32 to vector<32x32xf32>
    %53 = arith.mulf %51, %52 : vector<32x32xf32>
    %cst_13 = arith.constant -1.000000e+30 : f32
    %54 = vector.broadcast %cst_13 : f32 to vector<32x32xf32>
    %55 = arith.select %46, %53, %54 : vector<32x32xi1>, vector<32x32xf32>
    %cst_14 = arith.constant dense<0xFF800000> : vector<32xf32>
    %56 = vector.multi_reduction <maximumf>, %55, %cst_14 [1] : vector<32x32xf32> to vector<32xf32>
    %57 = vector.shape_cast %56 : vector<32xf32> to vector<32x1xf32>
    %58 = vector.broadcast %57 : vector<32x1xf32> to vector<32x32xf32>
    %59 = arith.subf %55, %58 : vector<32x32xf32>
    %60 = math.exp %59 : vector<32x32xf32>
    %cst_15 = arith.constant dense<0.000000e+00> : vector<32xf32>
    %61 = vector.multi_reduction <add>, %60, %cst_15 [1] : vector<32x32xf32> to vector<32xf32>
    %62 = vector.shape_cast %61 : vector<32xf32> to vector<32x1xf32>
    %63 = tpu.reciprocal %62 {approx = true} : vector<32x1xf32> -> vector<32x1xf32>
    %64 = vector.broadcast %63 : vector<32x1xf32> to vector<32x32xf32>
    %65 = arith.mulf %60, %64 : vector<32x32xf32>
    %c0_i32_16 = arith.constant 0 : i32
    %66 = vector.broadcast %c0_i32_16 : i32 to vector<32x32xi32>
    %67 = arith.cmpi sge, %47, %66 : vector<32x32xi32>
    %c8_i32 = arith.constant 8 : i32
    %68 = vector.broadcast %c8_i32 : i32 to vector<32x32xi32>
    %69 = arith.cmpi slt, %47, %68 : vector<32x32xi32>
    %70 = arith.andi %67, %69 : vector<32x32xi1>
    %cst_17 = arith.constant 0.000000e+00 : bf16
    %71 = vector.broadcast %cst_17 : bf16 to vector<32x32xbf16>
    %72 = arith.select %70, %39, %71 : vector<32x32xi1>, vector<32x32xbf16>
    %73 = arith.truncf %65 : vector<32x32xf32> to vector<32x32xbf16>
    %cst_18 = arith.constant dense<0.000000e+00> : vector<32x32xf32>
    %74 = tpu.matmul %73, %72, %cst_18 {dimension_numbers = #tpu.dot_dimension_numbers<[1], [0], [0], [1], [0, 0, 1, 1], [], []>} : vector<32x32xbf16>, vector<32x32xbf16>, vector<32x32xf32> -> vector<32x32xf32>
    %75 = arith.addf %48, %74 : vector<32x32xf32>
    %76 = vector.extract_strided_slice %35 {offsets = [0, 8], sizes = [32, 8], strides = [1, 1]} : vector<32x32xbf16> to vector<32x8xbf16>
    %77 = vector.extract_strided_slice %37 {offsets = [0, 8], sizes = [32, 8], strides = [1, 1]} : vector<32x32xbf16> to vector<32x8xbf16>
    %cst_19 = arith.constant dense<0.000000e+00> : vector<32x32xf32>
    %78 = tpu.matmul %76, %77, %cst_19 {dimension_numbers = #tpu.dot_dimension_numbers<[1], [1], [0], [0], [0, 0, 1, 0], [], []>} : vector<32x8xbf16>, vector<32x8xbf16>, vector<32x32xf32> -> vector<32x32xf32>
    %cst_20 = arith.constant 0.353553385 : f32
    %79 = vector.broadcast %cst_20 : f32 to vector<32x32xf32>
    %80 = arith.mulf %78, %79 : vector<32x32xf32>
    %cst_21 = arith.constant -1.000000e+30 : f32
    %81 = vector.broadcast %cst_21 : f32 to vector<32x32xf32>
    %82 = arith.select %46, %80, %81 : vector<32x32xi1>, vector<32x32xf32>
    %cst_22 = arith.constant dense<0xFF800000> : vector<32xf32>
    %83 = vector.multi_reduction <maximumf>, %82, %cst_22 [1] : vector<32x32xf32> to vector<32xf32>
    %84 = vector.shape_cast %83 : vector<32xf32> to vector<32x1xf32>
    %85 = vector.broadcast %84 : vector<32x1xf32> to vector<32x32xf32>
    %86 = arith.subf %82, %85 : vector<32x32xf32>
    %87 = math.exp %86 : vector<32x32xf32>
    %cst_23 = arith.constant dense<0.000000e+00> : vector<32xf32>
    %88 = vector.multi_reduction <add>, %87, %cst_23 [1] : vector<32x32xf32> to vector<32xf32>
    %89 = vector.shape_cast %88 : vector<32xf32> to vector<32x1xf32>
    %90 = tpu.reciprocal %89 {approx = true} : vector<32x1xf32> -> vector<32x1xf32>
    %91 = vector.broadcast %90 : vector<32x1xf32> to vector<32x32xf32>
    %92 = arith.mulf %87, %91 : vector<32x32xf32>
    %c8_i32_24 = arith.constant 8 : i32
    %93 = vector.broadcast %c8_i32_24 : i32 to vector<32x32xi32>
    %94 = arith.cmpi sge, %47, %93 : vector<32x32xi32>
    %c16_i32 = arith.constant 16 : i32
    %95 = vector.broadcast %c16_i32 : i32 to vector<32x32xi32>
    %96 = arith.cmpi slt, %47, %95 : vector<32x32xi32>
    %97 = arith.andi %94, %96 : vector<32x32xi1>
    %cst_25 = arith.constant 0.000000e+00 : bf16
    %98 = vector.broadcast %cst_25 : bf16 to vector<32x32xbf16>
    %99 = arith.select %97, %39, %98 : vector<32x32xi1>, vector<32x32xbf16>
    %100 = arith.truncf %92 : vector<32x32xf32> to vector<32x32xbf16>
    %cst_26 = arith.constant dense<0.000000e+00> : vector<32x32xf32>
    %101 = tpu.matmul %100, %99, %cst_26 {dimension_numbers = #tpu.dot_dimension_numbers<[1], [0], [0], [1], [0, 0, 1, 1], [], []>} : vector<32x32xbf16>, vector<32x32xbf16>, vector<32x32xf32> -> vector<32x32xf32>
    %102 = arith.addf %75, %101 : vector<32x32xf32>
    %103 = vector.extract_strided_slice %35 {offsets = [0, 16], sizes = [32, 8], strides = [1, 1]} : vector<32x32xbf16> to vector<32x8xbf16>
    %104 = vector.extract_strided_slice %37 {offsets = [0, 16], sizes = [32, 8], strides = [1, 1]} : vector<32x32xbf16> to vector<32x8xbf16>
    %cst_27 = arith.constant dense<0.000000e+00> : vector<32x32xf32>
    %105 = tpu.matmul %103, %104, %cst_27 {dimension_numbers = #tpu.dot_dimension_numbers<[1], [1], [0], [0], [0, 0, 1, 0], [], []>} : vector<32x8xbf16>, vector<32x8xbf16>, vector<32x32xf32> -> vector<32x32xf32>
    %cst_28 = arith.constant 0.353553385 : f32
    %106 = vector.broadcast %cst_28 : f32 to vector<32x32xf32>
    %107 = arith.mulf %105, %106 : vector<32x32xf32>
    %cst_29 = arith.constant -1.000000e+30 : f32
    %108 = vector.broadcast %cst_29 : f32 to vector<32x32xf32>
    %109 = arith.select %46, %107, %108 : vector<32x32xi1>, vector<32x32xf32>
    %cst_30 = arith.constant dense<0xFF800000> : vector<32xf32>
    %110 = vector.multi_reduction <maximumf>, %109, %cst_30 [1] : vector<32x32xf32> to vector<32xf32>
    %111 = vector.shape_cast %110 : vector<32xf32> to vector<32x1xf32>
    %112 = vector.broadcast %111 : vector<32x1xf32> to vector<32x32xf32>
    %113 = arith.subf %109, %112 : vector<32x32xf32>
    %114 = math.exp %113 : vector<32x32xf32>
    %cst_31 = arith.constant dense<0.000000e+00> : vector<32xf32>
    %115 = vector.multi_reduction <add>, %114, %cst_31 [1] : vector<32x32xf32> to vector<32xf32>
    %116 = vector.shape_cast %115 : vector<32xf32> to vector<32x1xf32>
    %117 = tpu.reciprocal %116 {approx = true} : vector<32x1xf32> -> vector<32x1xf32>
    %118 = vector.broadcast %117 : vector<32x1xf32> to vector<32x32xf32>
    %119 = arith.mulf %114, %118 : vector<32x32xf32>
    %c16_i32_32 = arith.constant 16 : i32
    %120 = vector.broadcast %c16_i32_32 : i32 to vector<32x32xi32>
    %121 = arith.cmpi sge, %47, %120 : vector<32x32xi32>
    %c24_i32 = arith.constant 24 : i32
    %122 = vector.broadcast %c24_i32 : i32 to vector<32x32xi32>
    %123 = arith.cmpi slt, %47, %122 : vector<32x32xi32>
    %124 = arith.andi %121, %123 : vector<32x32xi1>
    %cst_33 = arith.constant 0.000000e+00 : bf16
    %125 = vector.broadcast %cst_33 : bf16 to vector<32x32xbf16>
    %126 = arith.select %124, %39, %125 : vector<32x32xi1>, vector<32x32xbf16>
    %127 = arith.truncf %119 : vector<32x32xf32> to vector<32x32xbf16>
    %cst_34 = arith.constant dense<0.000000e+00> : vector<32x32xf32>
    %128 = tpu.matmul %127, %126, %cst_34 {dimension_numbers = #tpu.dot_dimension_numbers<[1], [0], [0], [1], [0, 0, 1, 1], [], []>} : vector<32x32xbf16>, vector<32x32xbf16>, vector<32x32xf32> -> vector<32x32xf32>
    %129 = arith.addf %102, %128 : vector<32x32xf32>
    %130 = vector.extract_strided_slice %35 {offsets = [0, 24], sizes = [32, 8], strides = [1, 1]} : vector<32x32xbf16> to vector<32x8xbf16>
    %131 = vector.extract_strided_slice %37 {offsets = [0, 24], sizes = [32, 8], strides = [1, 1]} : vector<32x32xbf16> to vector<32x8xbf16>
    %cst_35 = arith.constant dense<0.000000e+00> : vector<32x32xf32>
    %132 = tpu.matmul %130, %131, %cst_35 {dimension_numbers = #tpu.dot_dimension_numbers<[1], [1], [0], [0], [0, 0, 1, 0], [], []>} : vector<32x8xbf16>, vector<32x8xbf16>, vector<32x32xf32> -> vector<32x32xf32>
    %cst_36 = arith.constant 0.353553385 : f32
    %133 = vector.broadcast %cst_36 : f32 to vector<32x32xf32>
    %134 = arith.mulf %132, %133 : vector<32x32xf32>
    %cst_37 = arith.constant -1.000000e+30 : f32
    %135 = vector.broadcast %cst_37 : f32 to vector<32x32xf32>
    %136 = arith.select %46, %134, %135 : vector<32x32xi1>, vector<32x32xf32>
    %cst_38 = arith.constant dense<0xFF800000> : vector<32xf32>
    %137 = vector.multi_reduction <maximumf>, %136, %cst_38 [1] : vector<32x32xf32> to vector<32xf32>
    %138 = vector.shape_cast %137 : vector<32xf32> to vector<32x1xf32>
    %139 = vector.broadcast %138 : vector<32x1xf32> to vector<32x32xf32>
    %140 = arith.subf %136, %139 : vector<32x32xf32>
    %141 = math.exp %140 : vector<32x32xf32>
    %cst_39 = arith.constant dense<0.000000e+00> : vector<32xf32>
    %142 = vector.multi_reduction <add>, %141, %cst_39 [1] : vector<32x32xf32> to vector<32xf32>
    %143 = vector.shape_cast %142 : vector<32xf32> to vector<32x1xf32>
    %144 = tpu.reciprocal %143 {approx = true} : vector<32x1xf32> -> vector<32x1xf32>
    %145 = vector.broadcast %144 : vector<32x1xf32> to vector<32x32xf32>
    %146 = arith.mulf %141, %145 : vector<32x32xf32>
    %c24_i32_40 = arith.constant 24 : i32
    %147 = vector.broadcast %c24_i32_40 : i32 to vector<32x32xi32>
    %148 = arith.cmpi sge, %47, %147 : vector<32x32xi32>
    %c32_i32 = arith.constant 32 : i32
    %149 = vector.broadcast %c32_i32 : i32 to vector<32x32xi32>
    %150 = arith.cmpi slt, %47, %149 : vector<32x32xi32>
    %151 = arith.andi %148, %150 : vector<32x32xi1>
    %cst_41 = arith.constant 0.000000e+00 : bf16
    %152 = vector.broadcast %cst_41 : bf16 to vector<32x32xbf16>
    %153 = arith.select %151, %39, %152 : vector<32x32xi1>, vector<32x32xbf16>
    %154 = arith.truncf %146 : vector<32x32xf32> to vector<32x32xbf16>
    %cst_42 = arith.constant dense<0.000000e+00> : vector<32x32xf32>
    %155 = tpu.matmul %154, %153, %cst_42 {dimension_numbers = #tpu.dot_dimension_numbers<[1], [0], [0], [1], [0, 0, 1, 1], [], []>} : vector<32x32xbf16>, vector<32x32xbf16>, vector<32x32xf32> -> vector<32x32xf32>
    %156 = arith.addf %129, %155 : vector<32x32xf32>
    %157 = arith.addf %30, %156 : vector<32x32xf32>
    %cst_43 = arith.constant dense<0.000000e+00> : vector<32xf32>
    %158 = vector.multi_reduction <add>, %157, %cst_43 [1] : vector<32x32xf32> to vector<32xf32>
    %159 = vector.shape_cast %158 : vector<32xf32> to vector<32x1xf32>
    %cst_44 = arith.constant 3.200000e+01 : f32
    %160 = vector.broadcast %cst_44 : f32 to vector<32x1xf32>
    %161 = arith.divf %159, %160 : vector<32x1xf32>
    %162 = vector.broadcast %161 : vector<32x1xf32> to vector<32x32xf32>
    %163 = arith.subf %157, %162 : vector<32x32xf32>
    %164 = arith.mulf %163, %163 : vector<32x32xf32>
    %cst_45 = arith.constant dense<0.000000e+00> : vector<32xf32>
    %165 = vector.multi_reduction <add>, %164, %cst_45 [1] : vector<32x32xf32> to vector<32xf32>
    %166 = vector.shape_cast %165 : vector<32xf32> to vector<32x1xf32>
    %cst_46 = arith.constant 3.200000e+01 : f32
    %167 = vector.broadcast %cst_46 : f32 to vector<32x1xf32>
    %168 = arith.divf %166, %167 : vector<32x1xf32>
    %169 = vector.broadcast %161 : vector<32x1xf32> to vector<32x32xf32>
    %170 = arith.subf %157, %169 : vector<32x32xf32>
    %cst_47 = arith.constant 9.99999974E-6 : f32
    %171 = vector.broadcast %cst_47 : f32 to vector<32x1xf32>
    %172 = arith.addf %168, %171 : vector<32x1xf32>
    %173 = math.rsqrt %172 : vector<32x1xf32>
    %174 = vector.broadcast %173 : vector<32x1xf32> to vector<32x32xf32>
    %175 = arith.mulf %170, %174 : vector<32x32xf32>
    %176 = vector.broadcast %5 : vector<1x32xf32> to vector<32x32xf32>
    %177 = arith.mulf %175, %176 : vector<32x32xf32>
    %178 = vector.broadcast %6 : vector<1x32xf32> to vector<32x32xf32>
    %179 = arith.addf %177, %178 : vector<32x32xf32>
    %180 = arith.truncf %179 : vector<32x32xf32> to vector<32x32xbf16>
    %181 = vector.extract_strided_slice %1 {offsets = [0, 96], sizes = [32, 32], strides = [1, 1]} : vector<32x160xbf16> to vector<32x32xbf16>
    %cst_48 = arith.constant dense<0.000000e+00> : vector<32x32xf32>
    %182 = tpu.matmul %180, %181, %cst_48 {dimension_numbers = #tpu.dot_dimension_numbers<[1], [0], [0], [1], [0, 0, 1, 1], [], []>} : vector<32x32xbf16>, vector<32x32xbf16>, vector<32x32xf32> -> vector<32x32xf32>
    %183 = vector.broadcast %7 : vector<1x32xf32> to vector<32x32xf32>
    %184 = arith.addf %182, %183 : vector<32x32xf32>
    %cst_49 = arith.constant 0.000000e+00 : f32
    %185 = vector.broadcast %cst_49 : f32 to vector<32x32xf32>
    %186 = arith.maximumf %184, %185 : vector<32x32xf32>
    %187 = arith.truncf %186 : vector<32x32xf32> to vector<32x32xbf16>
    %188 = vector.extract_strided_slice %1 {offsets = [0, 128], sizes = [32, 32], strides = [1, 1]} : vector<32x160xbf16> to vector<32x32xbf16>
    %cst_50 = arith.constant dense<0.000000e+00> : vector<32x32xf32>
    %189 = tpu.matmul %187, %188, %cst_50 {dimension_numbers = #tpu.dot_dimension_numbers<[1], [0], [0], [1], [0, 0, 1, 1], [], []>} : vector<32x32xbf16>, vector<32x32xbf16>, vector<32x32xf32> -> vector<32x32xf32>
    %190 = vector.broadcast %8 : vector<1x32xf32> to vector<32x32xf32>
    %191 = arith.addf %189, %190 : vector<32x32xf32>
    %192 = arith.addf %179, %191 : vector<32x32xf32>
    %c0_51 = arith.constant 0 : index
    %c0_52 = arith.constant 0 : index
    %193 = vector.load %arg3[%c0_51, %c0_52] : memref<32x32xf32, #tpu.memory_space<vmem>>, vector<32x32xf32>
    tpu.vector_store %arg3[%c0_51, %c0_52], %192 {strides = array<i32>} : memref<32x32xf32, #tpu.memory_space<vmem>>, vector<32x32xf32>,
    return
  }
}

</mosaic_0001>

<llo_original>
// kernel: sattention_forward.1
$region0: #{sattention_forward.1}
  #allocation0 [shape = 'u32[]', space=smem, size = 0x4, offset = 0x4, fixed_abs, tag = 'smem constant byte address 0x4 - core index']
  #allocation1 [shape = 'u32[144,128]{1,0:T(1,128)}', space=vmem, size = 0x12000, scoped, tag = 'internal scratch']
  %s0 = inlined_call_operand.vmem [shape: f32[32,32], index: 0, kind: input, shape index: {}]
  %s1 = inlined_call_operand.vmem [shape: bf16[32,160], index: 1, kind: input, shape index: {}]
  %s2 = inlined_call_operand.vmem [shape: f32[6,32], index: 2, kind: input, shape index: {}]
  %s3 = inlined_call_operand.hbm [shape: f32[32,32], index: 3, kind: output, shape index: {}]
  %s4 = sld [smem:[#allocation0]]
  $region22: #{sattention_forward.1} parent=0
    _
  %s6 = ssub.s32 1, %s4
  %s7 = scalar_select 0, %s6, %s4
  $region1: #{sattention_forward.1} parent=0
    #allocation2 [shape = 'u8[16384]{0}', space=vmem, size = 0x4000, scoped, tag = 'output window, operand 0, single buffered']
    #allocation3 [shape = 's32[1]{0}', space=sflag, size = 0x4, scoped, tag = 'scoped memory for sattention_forward.1']
    %8 = vsyncpa [#allocation3], 0
    // Predicated region
    $region2: #{sattention_forward.1} parent=1 // pred_check
      _
    $region3: #{sattention_forward.1} parent=1 // pred_check_branch
      %10 = sbr.rel (0) target = $region5
    $region4: #{sattention_forward.1} parent=1 // pred_region
      _
    $region5: #{sattention_forward.1} parent=1 // pred_fallthru
      _
    // Predicated region
    $region6: #{sattention_forward.1} parent=1 // pred_check
      _
    $region7: #{sattention_forward.1} parent=1 // pred_check_branch
      %12 = sbr.rel (0) target = $region9
    $region8: #{sattention_forward.1} parent=1 // pred_region
      _
    $region9: #{sattention_forward.1} parent=1 // pred_fallthru
      _
    // Predicated region
    $region10: #{sattention_forward.1} parent=1 // pred_check
      _
    $region11: #{sattention_forward.1} parent=1 // pred_check_branch
      %14 = sbr.rel (0) target = $region13
    $region12: #{sattention_forward.1} parent=1 // pred_region
      _
    $region13: #{sattention_forward.1} parent=1 // pred_fallthru
      _
    %v18 = vld [vmem:[%s0] sm:$0xff]
    %v19 = vld [vmem:[%s0 + $0x8] sm:$0xff]
    %v20 = vld [vmem:[%s0 + $0x10] sm:$0xff]
    %v21 = vld [vmem:[%s0 + $0x18] sm:$0xff]
    %v22 = vld [vmem:[%s1] sm:$0xff]
    %v23 = vld [vmem:[%s1 + $0x8] sm:$0xff]
    %v24 = vld [vmem:[%s1 + $0x10] sm:$0xff]
    %v25 = vld [vmem:[%s1 + $0x18] sm:$0xff]
    %v26 = vld [vmem:[%s2] sm:$0x3f]
    %vm27 = vcmask 261120
    %v28 = vsel %vm27, %v18, 0.0
    %29 = vadd.xlane.f32.xlu0 %v28
    %v30 = vpop.xlane.xlu0 %29
    %v31 = vsel %vm27, %v19, 0.0
    %32 = vadd.xlane.f32.xlu0 %v31
    %v33 = vpop.xlane.xlu0 %32
    %v34 = vsel %vm27, %v20, 0.0
    %35 = vadd.xlane.f32.xlu0 %v34
    %v36 = vpop.xlane.xlu0 %35
    %v37 = vsel %vm27, %v21, 0.0
    %38 = vadd.xlane.f32.xlu0 %v37
    %v39 = vpop.xlane.xlu0 %38
    %v40 = vrcp.pop 32.0
    %v41 = vmul.f32 %v30, %v40
    %v42 = vmul.f32 %v33, %v40
    %v43 = vmul.f32 %v36, %v40
    %v44 = vmul.f32 %v39, %v40
    %v45 = vsub.f32 %v18, %v41
    %v46 = vsub.f32 %v19, %v42
    %v47 = vsub.f32 %v20, %v43
    %v48 = vsub.f32 %v21, %v44
    %v49 = vmul.f32 %v45, %v45
    %v50 = vmul.f32 %v46, %v46
    %v51 = vmul.f32 %v47, %v47
    %v52 = vmul.f32 %v48, %v48
    %v53 = vsel %vm27, %v49, 0.0
    %54 = vadd.xlane.f32.xlu0 %v53
    %v55 = vpop.xlane.xlu0 %54
    %v56 = vsel %vm27, %v50, 0.0
    %57 = vadd.xlane.f32.xlu0 %v56
    %v58 = vpop.xlane.xlu0 %57
    %v59 = vsel %vm27, %v51, 0.0
    %60 = vadd.xlane.f32.xlu0 %v59
    %v61 = vpop.xlane.xlu0 %60
    %v62 = vsel %vm27, %v52, 0.0
    %63 = vadd.xlane.f32.xlu0 %v62
    %v64 = vpop.xlane.xlu0 %63
    %v65 = vmul.f32 %v55, %v40
    %v66 = vmul.f32 %v58, %v40
    %v67 = vmul.f32 %v61, %v40
    %v68 = vmul.f32 %v64, %v40
    %v69 = vadd.f32 %v65, 1e-05
    %v70 = vadd.f32 %v66, 1e-05
    %v71 = vadd.f32 %v67, 1e-05
    %v72 = vadd.f32 %v68, 1e-05
    %v73 = vrsqrt.pop %v69
    %v74 = vrsqrt.pop %v70
    %v75 = vrsqrt.pop %v71
    %v76 = vrsqrt.pop %v72
    %v77 = vmul.f32 %v45, %v73
    %v78 = vmul.f32 %v46, %v74
    %v79 = vmul.f32 %v47, %v75
    %v80 = vmul.f32 %v48, %v76
    %v81 = vlaneseq
    %v82 = vshrl.u32 %v81, 7
    %v83 = vsub.s32 0, %v82
    %v84 = vrot.slane %v26, %v83
    %v85 = vmul.f32 %v77, %v84
    %v86 = vmul.f32 %v78, %v84
    %v87 = vmul.f32 %v79, %v84
    %v88 = vmul.f32 %v80, %v84
    %v89 = vlaneseq
    %v90 = vshrl.u32 %v89, 7
    %v91 = vsub.s32 1, %v90
    %v92 = vrot.slane %v26, %v91
    %v93 = vadd.f32 %v85, %v92
    %v94 = vadd.f32 %v86, %v92
    %v95 = vadd.f32 %v87, %v92
    %v96 = vadd.f32 %v88, %v92
    %v97 = vpack.c.bf16 %v94, %v93
    %v98 = vpack.c.bf16 %v96, %v95
    %v103 = vunpack.c.l.b16 %v22
    %v104 = vunpack.c.l.b16 %v23
    %v105 = vunpack.c.l.b16 %v24
    %v106 = vunpack.c.l.b16 %v25
    %v107 = vpack.c.b16 %v104, %v103
    %v108 = vpack.c.b16 %v106, %v105
    %v112 = vsel %vm27, %v97, 0
    %v115 = vsel %vm27, %v98, 0
    %117 = vmatprep.subr.bf16.mxu0 0
    %118 = vmatpush1.bf16.msra.mxu0 %v107
    %119 = vmatprep.subr.bf16.mxu0 0
    %120 = vmatpush1.bf16.msra.mxu0 %v108
    %121 = vmatprep.subr.bf16.mxu0 0
    %122 = vmatpush1.bf16.msra.mxu0 0
    %123 = vmatprep.subr.bf16.mxu0 0
    %124 = vmatpush1.bf16.msra.mxu0 0
    %125 = vmatprep.subr.bf16.mxu0 0
    %126 = vmatpush1.bf16.msra.mxu0 0
    %127 = vmatprep.subr.bf16.mxu0 0
    %128 = vmatpush1.bf16.msra.mxu0 0
    %129 = vmatprep.subr.bf16.mxu0 0
    %130 = vmatpush1.bf16.msra.mxu0 0
    %131 = vmatprep.subr.bf16.mxu0 0
    %132 = vmatpush1.bf16.msra.mxu0 0
    %133 = vmatprep.subr.bf16.mxu0 0
    %134 = vmatpush1.bf16.msra.mxu0 0
    %135 = vmatprep.subr.bf16.mxu0 0
    %136 = vmatpush1.bf16.msra.mxu0 0
    %137 = vmatprep.subr.bf16.mxu0 0
    %138 = vmatpush1.bf16.msra.mxu0 0
    %139 = vmatprep.subr.bf16.mxu0 0
    %140 = vmatpush1.bf16.msra.mxu0 0
    %141 = vmatprep.subr.bf16.mxu0 0
    %142 = vmatpush1.bf16.msra.mxu0 0
    %143 = vmatprep.subr.bf16.mxu0 0
    %144 = vmatpush1.bf16.msra.mxu0 0
    %145 = vmatprep.subr.bf16.mxu0 0
    %146 = vmatpush1.bf16.msra.mxu0 0
    %147 = vmatprep.subr.bf16.mxu0 0
    %148 = vmatpush1.bf16.msra.mxu0 0
    %149 = vmatprep.mubr.bf16.mxu0 0
    %150 = vmatmul.mubr.bf16.gmra.mrb[0].mxu0 %v112
    %v151 = vpop.f32.mrb[0].mxu0
    %v152 = vadd.f32 0.0, %v151
    %v153 = vpop.f32.mrb[0].mxu0
    %v154 = vpop.f32.mrb[0].mxu0
    %v155 = vadd.f32 0.0, %v154
    %v156 = vpop.f32.mrb[0].mxu0
    %157 = vmatprep.mubr.bf16.mxu0 0
    %158 = vmatmul.mubr.bf16.gmra.mrb[0].mxu0 %v115
    %v159 = vpop.f32.mrb[0].mxu0
    %v160 = vadd.f32 0.0, %v159
    %v161 = vpop.f32.mrb[0].mxu0
    %v162 = vpop.f32.mrb[0].mxu0
    %v163 = vadd.f32 0.0, %v162
    %v164 = vpop.f32.mrb[0].mxu0
    %165 = vdwg.mxu0
    %v166 = vpack.c.bf16 %v155, %v152
    %v167 = vpack.c.bf16 %v163, %v160
    %v168 = vlaneseq
    %v169 = vshrl.u32 %v168, 7
    %v170 = vadd.s32 %v169, 8
    %v171 = vadd.s32 %v169, 16
    %v172 = vadd.s32 %v169, 24
    %v173 = vlaneseq
    %v174 = vand.u32 %v173, 127
    %v175 = vsub.s32 %v169, %v174
    %v176 = vsub.s32 %v170, %v174
    %v177 = vsub.s32 %v171, %v174
    %v178 = vsub.s32 %v172, %v174
    %v179 = vand.u32 %v175, 3
    %v180 = vand.u32 %v176, 3
    %v181 = vand.u32 %v177, 3
    %v182 = vand.u32 %v178, 3
    %vm183 = vcmp.eq.s32.totalorder %v179, 0
    %vm184 = vcmp.eq.s32.totalorder %v180, 0
    %vm185 = vcmp.eq.s32.totalorder %v181, 0
    %vm186 = vcmp.eq.s32.totalorder %v182, 0
    %189 = vrot.lane.b32.xlu0 %v166, 96
    %v190 = vpop.permute.xlu0 %189
    %191 = vrot.lane.b32.xlu0 %v167, 96
    %v192 = vpop.permute.xlu0 %191
    %vm193 = vcmask 64512
    %v195 = vsel %vm193, %v166, 0
    %v198 = vsel %vm193, %v167, 0
    %v201 = vsel %vm193, %v190, 0
    %v204 = vsel %vm193, %v192, 0
    %206 = vmatprep.subr.bf16.mxu0 0
    %207 = vmatpush1.bf16.xpose.msra.mxu0 %v201
    %208 = vmatprep.subr.bf16.mxu0 0
    %209 = vmatpush1.bf16.xpose.msra.mxu0 %v204
    %210 = vmatprep.subr.bf16.mxu0 0
    %211 = vmatpush1.bf16.xpose.msra.mxu0 0
    %212 = vmatprep.subr.bf16.mxu0 0
    %213 = vmatpush1.bf16.xpose.msra.mxu0 0
    %214 = vmatprep.subr.bf16.mxu0 0
    %215 = vmatpush1.bf16.xpose.msra.mxu0 0
    %216 = vmatprep.subr.bf16.mxu0 0
    %217 = vmatpush1.bf16.xpose.msra.mxu0 0
    %218 = vmatprep.subr.bf16.mxu0 0
    %219 = vmatpush1.bf16.xpose.msra.mxu0 0
    %220 = vmatprep.subr.bf16.mxu0 0
    %221 = vmatpush1.bf16.xpose.msra.mxu0 0
    %222 = vmatprep.subr.bf16.mxu0 0
    %223 = vmatpush1.bf16.xpose.msra.mxu0 0
    %224 = vmatprep.subr.bf16.mxu0 0
    %225 = vmatpush1.bf16.xpose.msra.mxu0 0
    %226 = vmatprep.subr.bf16.mxu0 0
    %227 = vmatpush1.bf16.xpose.msra.mxu0 0
    %228 = vmatprep.subr.bf16.mxu0 0
    %229 = vmatpush1.bf16.xpose.msra.mxu0 0
    %230 = vmatprep.subr.bf16.mxu0 0
    %231 = vmatpush1.bf16.xpose.msra.mxu0 0
    %232 = vmatprep.subr.bf16.mxu0 0
    %233 = vmatpush1.bf16.xpose.msra.mxu0 0
    %234 = vmatprep.subr.bf16.mxu0 0
    %235 = vmatpush1.bf16.xpose.msra.mxu0 0
    %236 = vmatprep.subr.bf16.mxu0 0
    %237 = vmatpush1.bf16.xpose.msra.mxu0 0
    %238 = vmatprep.mubr.bf16.mxu0 0
    %239 = vmatmul.mubr.bf16.gmra.mrb[0].mxu0 %v195
    %v240 = vpop.f32.mrb[0].mxu0
    %v241 = vadd.f32 0.0, %v240
    %v242 = vpop.f32.mrb[0].mxu0
    %v243 = vpop.f32.mrb[0].mxu0
    %v244 = vadd.f32 0.0, %v243
    %v245 = vpop.f32.mrb[0].mxu0
    %246 = vmatprep.mubr.bf16.mxu0 0
    %247 = vmatmul.mubr.bf16.gmra.mrb[0].mxu0 %v198
    %v248 = vpop.f32.mrb[0].mxu0
    %v249 = vadd.f32 0.0, %v248
    %v250 = vpop.f32.mrb[0].mxu0
    %v251 = vpop.f32.mrb[0].mxu0
    %v252 = vadd.f32 0.0, %v251
    %v253 = vpop.f32.mrb[0].mxu0
    %254 = vdwg.mxu0
    %v255 = vmul.f32 %v241, 0.35355338
    %v256 = vmul.f32 %v244, 0.35355338
    %v257 = vmul.f32 %v249, 0.35355338
    %v258 = vmul.f32 %v252, 0.35355338
    %v259 = vsel %vm183, %v255, -1e+30
    %v260 = vsel %vm184, %v256, -1e+30
    %v261 = vsel %vm185, %v257, -1e+30
    %v262 = vsel %vm186, %v258, -1e+30
    %v263 = vsel %vm27, %v259, -inf
    %264 = vmax.xlane.f32.xlu0 %v263
    %v265 = vpop.xlane.xlu0 %264
    %v266 = vsel %vm27, %v260, -inf
    %267 = vmax.xlane.f32.xlu0 %v266
    %v268 = vpop.xlane.xlu0 %267
    %v269 = vsel %vm27, %v261, -inf
    %270 = vmax.xlane.f32.xlu0 %v269
    %v271 = vpop.xlane.xlu0 %270
    %v272 = vsel %vm27, %v262, -inf
    %273 = vmax.xlane.f32.xlu0 %v272
    %v274 = vpop.xlane.xlu0 %273
    %v275 = vsub.f32 %v259, %v265
    %v276 = vsub.f32 %v260, %v268
    %v277 = vsub.f32 %v261, %v271
    %v278 = vsub.f32 %v262, %v274
    %v279 = vmul.f32 %v275, 1.442695
    %v280 = vpow.pop %v279
    %v281 = vmul.f32 %v276, 1.442695
    %v282 = vpow.pop %v281
    %v283 = vmul.f32 %v277, 1.442695
    %v284 = vpow.pop %v283
    %v285 = vmul.f32 %v278, 1.442695
    %v286 = vpow.pop %v285
    %v287 = vsel %vm27, %v280, 0.0
    %288 = vadd.xlane.f32.xlu0 %v287
    %v289 = vpop.xlane.xlu0 %288
    %v290 = vsel %vm27, %v282, 0.0
    %291 = vadd.xlane.f32.xlu0 %v290
    %v292 = vpop.xlane.xlu0 %291
    %v293 = vsel %vm27, %v284, 0.0
    %294 = vadd.xlane.f32.xlu0 %v293
    %v295 = vpop.xlane.xlu0 %294
    %v296 = vsel %vm27, %v286, 0.0
    %297 = vadd.xlane.f32.xlu0 %v296
    %v298 = vpop.xlane.xlu0 %297
    %v299 = vrcp.pop %v289
    %v300 = vrcp.pop %v292
    %v301 = vrcp.pop %v295
    %v302 = vrcp.pop %v298
    %v303 = vmul.f32 %v280, %v299
    %v304 = vmul.f32 %v282, %v300
    %v305 = vmul.f32 %v284, %v301
    %v306 = vmul.f32 %v286, %v302
    %vm307 = vcmp.ge.s32.totalorder %v174, 0
    %vm308 = vcmp.lt.s32.totalorder %v174, 8
    %vm309 = vmand %vm307, %vm308
    %vm310 = vmpackc.low %vm309, %vm309
    %v311 = vsel %vm310, 65537, 0
    %v312 = vlaneseq
    %v313 = vshrl.u32 %v312, 7
    %v314 = vsub.s32 0, %v313
    %v315 = vrot.slane %v311, %v314
    %316 = vrot.lane.b32.xlu0 %v315, 64
    %v317 = vpop.permute.xlu0 %316
    %vm318 = vcmp.ne.s16.totalorder %v317, 0
    %v319 = vsel %vm318, %v166, 0
    %v320 = vsel %vm318, %v167, 0
    %v321 = vpack.c.bf16 %v304, %v303
    %v322 = vpack.c.bf16 %v306, %v305
    %323 = vrot.lane.b32.xlu0 %v166, 120
    %v324 = vpop.permute.xlu0 %323
    %325 = vrot.lane.b32.xlu0 %v167, 120
    %v326 = vpop.permute.xlu0 %325
    %327 = vrot.lane.b32.xlu0 %v166, 88
    %v328 = vpop.permute.xlu0 %327
    %329 = vrot.lane.b32.xlu0 %v167, 88
    %v330 = vpop.permute.xlu0 %329
    %v332 = vsel %vm193, %v324, 0
    %v335 = vsel %vm193, %v326, 0
    %v338 = vsel %vm193, %v328, 0
    %v341 = vsel %vm193, %v330, 0
    %343 = vmatprep.subr.bf16.mxu0 0
    %344 = vmatpush1.bf16.xpose.msra.mxu0 %v338
    %345 = vmatprep.subr.bf16.mxu0 0
    %346 = vmatpush1.bf16.xpose.msra.mxu0 %v341
    %347 = vmatprep.subr.bf16.mxu0 0
    %348 = vmatpush1.bf16.xpose.msra.mxu0 0
    %349 = vmatprep.subr.bf16.mxu0 0
    %350 = vmatpush1.bf16.xpose.msra.mxu0 0
    %351 = vmatprep.subr.bf16.mxu0 0
    %352 = vmatpush1.bf16.xpose.msra.mxu0 0
    %353 = vmatprep.subr.bf16.mxu0 0
    %354 = vmatpush1.bf16.xpose.msra.mxu0 0
    %355 = vmatprep.subr.bf16.mxu0 0
    %356 = vmatpush1.bf16.xpose.msra.mxu0 0
    %357 = vmatprep.subr.bf16.mxu0 0
    %358 = vmatpush1.bf16.xpose.msra.mxu0 0
    %359 = vmatprep.subr.bf16.mxu0 0
    %360 = vmatpush1.bf16.xpose.msra.mxu0 0
    %361 = vmatprep.subr.bf16.mxu0 0
    %362 = vmatpush1.bf16.xpose.msra.mxu0 0
    %363 = vmatprep.subr.bf16.mxu0 0
    %364 = vmatpush1.bf16.xpose.msra.mxu0 0
    %365 = vmatprep.subr.bf16.mxu0 0
    %366 = vmatpush1.bf16.xpose.msra.mxu0 0
    %367 = vmatprep.subr.bf16.mxu0 0
    %368 = vmatpush1.bf16.xpose.msra.mxu0 0
    %369 = vmatprep.subr.bf16.mxu0 0
    %370 = vmatpush1.bf16.xpose.msra.mxu0 0
    %371 = vmatprep.subr.bf16.mxu0 0
    %372 = vmatpush1.bf16.xpose.msra.mxu0 0
    %373 = vmatprep.subr.bf16.mxu0 0
    %374 = vmatpush1.bf16.xpose.msra.mxu0 0
    %375 = vmatprep.mubr.bf16.mxu0 0
    %376 = vmatmul.mubr.bf16.gmra.mrb[0].mxu0 %v332
    %v377 = vpop.f32.mrb[0].mxu0
    %v378 = vadd.f32 0.0, %v377
    %v379 = vpop.f32.mrb[0].mxu0
    %v380 = vpop.f32.mrb[0].mxu0
    %v381 = vadd.f32 0.0, %v380
    %v382 = vpop.f32.mrb[0].mxu0
    %383 = vmatprep.mubr.bf16.mxu0 0
    %384 = vmatmul.mubr.bf16.gmra.mrb[0].mxu0 %v335
    %v385 = vpop.f32.mrb[0].mxu0
    %v386 = vadd.f32 0.0, %v385
    %v387 = vpop.f32.mrb[0].mxu0
    %v388 = vpop.f32.mrb[0].mxu0
    %v389 = vadd.f32 0.0, %v388
    %v390 = vpop.f32.mrb[0].mxu0
    %391 = vdwg.mxu0
    %v392 = vmul.f32 %v378, 0.35355338
    %v393 = vmul.f32 %v381, 0.35355338
    %v394 = vmul.f32 %v386, 0.35355338
    %v395 = vmul.f32 %v389, 0.35355338
    %v396 = vsel %vm183, %v392, -1e+30
    %v397 = vsel %vm184, %v393, -1e+30
    %v398 = vsel %vm185, %v394, -1e+30
    %v399 = vsel %vm186, %v395, -1e+30
    %v400 = vsel %vm27, %v396, -inf
    %401 = vmax.xlane.f32.xlu0 %v400
    %v402 = vpop.xlane.xlu0 %401
    %v403 = vsel %vm27, %v397, -inf
    %404 = vmax.xlane.f32.xlu0 %v403
    %v405 = vpop.xlane.xlu0 %404
    %v406 = vsel %vm27, %v398, -inf
    %407 = vmax.xlane.f32.xlu0 %v406
    %v408 = vpop.xlane.xlu0 %407
    %v409 = vsel %vm27, %v399, -inf
    %410 = vmax.xlane.f32.xlu0 %v409
    %v411 = vpop.xlane.xlu0 %410
    %v412 = vsub.f32 %v396, %v402
    %v413 = vsub.f32 %v397, %v405
    %v414 = vsub.f32 %v398, %v408
    %v415 = vsub.f32 %v399, %v411
    %v416 = vmul.f32 %v412, 1.442695
    %v417 = vpow.pop %v416
    %v418 = vmul.f32 %v413, 1.442695
    %v419 = vpow.pop %v418
    %v420 = vmul.f32 %v414, 1.442695
    %v421 = vpow.pop %v420
    %v422 = vmul.f32 %v415, 1.442695
    %v423 = vpow.pop %v422
    %v424 = vsel %vm27, %v417, 0.0
    %425 = vadd.xlane.f32.xlu0 %v424
    %v426 = vpop.xlane.xlu0 %425
    %v427 = vsel %vm27, %v419, 0.0
    %428 = vadd.xlane.f32.xlu0 %v427
    %v429 = vpop.xlane.xlu0 %428
    %v430 = vsel %vm27, %v421, 0.0
    %431 = vadd.xlane.f32.xlu0 %v430
    %v432 = vpop.xlane.xlu0 %431
    %v433 = vsel %vm27, %v423, 0.0
    %434 = vadd.xlane.f32.xlu0 %v433
    %v435 = vpop.xlane.xlu0 %434
    %v436 = vrcp.pop %v426
    %v437 = vrcp.pop %v429
    %v438 = vrcp.pop %v432
    %v439 = vrcp.pop %v435
    %v440 = vmul.f32 %v417, %v436
    %v441 = vmul.f32 %v419, %v437
    %v442 = vmul.f32 %v421, %v438
    %v443 = vmul.f32 %v423, %v439
    %vm444 = vcmp.ge.s32.totalorder %v174, 8
    %vm445 = vcmp.lt.s32.totalorder %v174, 16
    %vm446 = vmand %vm444, %vm445
    %vm447 = vmpackc.low %vm446, %vm446
    %v448 = vsel %vm447, 65537, 0
    %v449 = vlaneseq
    %v450 = vshrl.u32 %v449, 7
    %v451 = vsub.s32 0, %v450
    %v452 = vrot.slane %v448, %v451
    %453 = vrot.lane.b32.xlu0 %v452, 64
    %v454 = vpop.permute.xlu0 %453
    %vm455 = vcmp.ne.s16.totalorder %v454, 0
    %v456 = vsel %vm455, %v166, 0
    %v457 = vsel %vm455, %v167, 0
    %v458 = vpack.c.bf16 %v441, %v440
    %v459 = vpack.c.bf16 %v443, %v442
    %462 = vrot.lane.b32.xlu0 %v456, 64
    %v463 = vpop.permute.xlu0 %462
    %464 = vrot.lane.b32.xlu0 %v457, 64
    %v465 = vpop.permute.xlu0 %464
    %v469 = vsel %vm27, %v458, 0
    %v472 = vsel %vm27, %v459, 0
    %474 = vmatprep.subr.bf16.mxu0 0
    %475 = vmatpush1.bf16.msra.mxu0 %v463
    %476 = vmatprep.subr.bf16.mxu0 0
    %477 = vmatpush1.bf16.msra.mxu0 %v465
    %478 = vmatprep.subr.bf16.mxu0 0
    %479 = vmatpush1.bf16.msra.mxu0 0
    %480 = vmatprep.subr.bf16.mxu0 0
    %481 = vmatpush1.bf16.msra.mxu0 0
    %482 = vmatprep.subr.bf16.mxu0 0
    %483 = vmatpush1.bf16.msra.mxu0 0
    %484 = vmatprep.subr.bf16.mxu0 0
    %485 = vmatpush1.bf16.msra.mxu0 0
    %486 = vmatprep.subr.bf16.mxu0 0
    %487 = vmatpush1.bf16.msra.mxu0 0
    %488 = vmatprep.subr.bf16.mxu0 0
    %489 = vmatpush1.bf16.msra.mxu0 0
    %490 = vmatprep.subr.bf16.mxu0 0
    %491 = vmatpush1.bf16.msra.mxu0 0
    %492 = vmatprep.subr.bf16.mxu0 0
    %493 = vmatpush1.bf16.msra.mxu0 0
    %494 = vmatprep.subr.bf16.mxu0 0
    %495 = vmatpush1.bf16.msra.mxu0 0
    %496 = vmatprep.subr.bf16.mxu0 0
    %497 = vmatpush1.bf16.msra.mxu0 0
    %498 = vmatprep.subr.bf16.mxu0 0
    %499 = vmatpush1.bf16.msra.mxu0 0
    %500 = vmatprep.subr.bf16.mxu0 0
    %501 = vmatpush1.bf16.msra.mxu0 0
    %502 = vmatprep.subr.bf16.mxu0 0
    %503 = vmatpush1.bf16.msra.mxu0 0
    %504 = vmatprep.subr.bf16.mxu0 0
    %505 = vmatpush1.bf16.msra.mxu0 0
    %506 = vmatprep.mubr.bf16.mxu0 0
    %507 = vmatmul.mubr.bf16.gmra.mrb[0].mxu0 %v469
    %v508 = vpop.f32.mrb[0].mxu0
    %v509 = vadd.f32 0.0, %v508
    %v510 = vpop.f32.mrb[0].mxu0
    %v511 = vpop.f32.mrb[0].mxu0
    %v512 = vadd.f32 0.0, %v511
    %v513 = vpop.f32.mrb[0].mxu0
    %514 = vmatprep.mubr.bf16.mxu0 0
    %515 = vmatmul.mubr.bf16.gmra.mrb[0].mxu0 %v472
    %v516 = vpop.f32.mrb[0].mxu0
    %v517 = vadd.f32 0.0, %v516
    %v518 = vpop.f32.mrb[0].mxu0
    %v519 = vpop.f32.mrb[0].mxu0
    %v520 = vadd.f32 0.0, %v519
    %v521 = vpop.f32.mrb[0].mxu0
    %522 = vdwg.mxu0
    %525 = vrot.lane.b32.xlu0 %v319, 64
    %v526 = vpop.permute.xlu0 %525
    %527 = vrot.lane.b32.xlu0 %v320, 64
    %v528 = vpop.permute.xlu0 %527
    %v532 = vsel %vm27, %v321, 0
    %v535 = vsel %vm27, %v322, 0
    %537 = vmatprep.subr.bf16.mxu0 0
    %538 = vmatpush1.bf16.msra.mxu0 %v526
    %539 = vmatprep.subr.bf16.mxu0 0
    %540 = vmatpush1.bf16.msra.mxu0 %v528
    %541 = vmatprep.subr.bf16.mxu0 0
    %542 = vmatpush1.bf16.msra.mxu0 0
    %543 = vmatprep.subr.bf16.mxu0 0
    %544 = vmatpush1.bf16.msra.mxu0 0
    %545 = vmatprep.subr.bf16.mxu0 0
    %546 = vmatpush1.bf16.msra.mxu0 0
    %547 = vmatprep.subr.bf16.mxu0 0
    %548 = vmatpush1.bf16.msra.mxu0 0
    %549 = vmatprep.subr.bf16.mxu0 0
    %550 = vmatpush1.bf16.msra.mxu0 0
    %551 = vmatprep.subr.bf16.mxu0 0
    %552 = vmatpush1.bf16.msra.mxu0 0
    %553 = vmatprep.subr.bf16.mxu0 0
    %554 = vmatpush1.bf16.msra.mxu0 0
    %555 = vmatprep.subr.bf16.mxu0 0
    %556 = vmatpush1.bf16.msra.mxu0 0
    %557 = vmatprep.subr.bf16.mxu0 0
    %558 = vmatpush1.bf16.msra.mxu0 0
    %559 = vmatprep.subr.bf16.mxu0 0
    %560 = vmatpush1.bf16.msra.mxu0 0
    %561 = vmatprep.subr.bf16.mxu0 0
    %562 = vmatpush1.bf16.msra.mxu0 0
    %563 = vmatprep.subr.bf16.mxu0 0
    %564 = vmatpush1.bf16.msra.mxu0 0
    %565 = vmatprep.subr.bf16.mxu0 0
    %566 = vmatpush1.bf16.msra.mxu0 0
    %567 = vmatprep.subr.bf16.mxu0 0
    %568 = vmatpush1.bf16.msra.mxu0 0
    %569 = vmatprep.mubr.bf16.mxu0 0
    %570 = vmatmul.mubr.bf16.gmra.mrb[0].mxu0 %v532
    %v571 = vpop.f32.mrb[0].mxu0
    %v572 = vadd.f32 %v509, %v571
    %v573 = vpop.f32.mrb[0].mxu0
    %v574 = vpop.f32.mrb[0].mxu0
    %v575 = vadd.f32 %v512, %v574
    %v576 = vpop.f32.mrb[0].mxu0
    %577 = vmatprep.mubr.bf16.mxu0 0
    %578 = vmatmul.mubr.bf16.gmra.mrb[0].mxu0 %v535
    %v579 = vpop.f32.mrb[0].mxu0
    %v580 = vadd.f32 %v517, %v579
    %v581 = vpop.f32.mrb[0].mxu0
    %v582 = vpop.f32.mrb[0].mxu0
    %v583 = vadd.f32 %v520, %v582
    %v584 = vpop.f32.mrb[0].mxu0
    %585 = vdwg.mxu0
    %586 = vrot.lane.b32.xlu0 %v166, 112
    %v587 = vpop.permute.xlu0 %586
    %588 = vrot.lane.b32.xlu0 %v167, 112
    %v589 = vpop.permute.xlu0 %588
    %590 = vrot.lane.b32.xlu0 %v166, 80
    %v591 = vpop.permute.xlu0 %590
    %592 = vrot.lane.b32.xlu0 %v167, 80
    %v593 = vpop.permute.xlu0 %592
    %v595 = vsel %vm193, %v587, 0
    %v598 = vsel %vm193, %v589, 0
    %v601 = vsel %vm193, %v591, 0
    %v604 = vsel %vm193, %v593, 0
    %606 = vmatprep.subr.bf16.mxu0 0
    %607 = vmatpush1.bf16.xpose.msra.mxu0 %v601
    %608 = vmatprep.subr.bf16.mxu0 0
    %609 = vmatpush1.bf16.xpose.msra.mxu0 %v604
    %610 = vmatprep.subr.bf16.mxu0 0
    %611 = vmatpush1.bf16.xpose.msra.mxu0 0
    %612 = vmatprep.subr.bf16.mxu0 0
    %613 = vmatpush1.bf16.xpose.msra.mxu0 0
    %614 = vmatprep.subr.bf16.mxu0 0
    %615 = vmatpush1.bf16.xpose.msra.mxu0 0
    %616 = vmatprep.subr.bf16.mxu0 0
    %617 = vmatpush1.bf16.xpose.msra.mxu0 0
    %618 = vmatprep.subr.bf16.mxu0 0
    %619 = vmatpush1.bf16.xpose.msra.mxu0 0
    %620 = vmatprep.subr.bf16.mxu0 0
    %621 = vmatpush1.bf16.xpose.msra.mxu0 0
    %622 = vmatprep.subr.bf16.mxu0 0
    %623 = vmatpush1.bf16.xpose.msra.mxu0 0
    %624 = vmatprep.subr.bf16.mxu0 0
    %625 = vmatpush1.bf16.xpose.msra.mxu0 0
    %626 = vmatprep.subr.bf16.mxu0 0
    %627 = vmatpush1.bf16.xpose.msra.mxu0 0
    %628 = vmatprep.subr.bf16.mxu0 0
    %629 = vmatpush1.bf16.xpose.msra.mxu0 0
    %630 = vmatprep.subr.bf16.mxu0 0
    %631 = vmatpush1.bf16.xpose.msra.mxu0 0
    %632 = vmatprep.subr.bf16.mxu0 0
    %633 = vmatpush1.bf16.xpose.msra.mxu0 0
    %634 = vmatprep.subr.bf16.mxu0 0
    %635 = vmatpush1.bf16.xpose.msra.mxu0 0
    %636 = vmatprep.subr.bf16.mxu0 0
    %637 = vmatpush1.bf16.xpose.msra.mxu0 0
    %638 = vmatprep.mubr.bf16.mxu0 0
    %639 = vmatmul.mubr.bf16.gmra.mrb[0].mxu0 %v595
    %v640 = vpop.f32.mrb[0].mxu0
    %v641 = vadd.f32 0.0, %v640
    %v642 = vpop.f32.mrb[0].mxu0
    %v643 = vpop.f32.mrb[0].mxu0
    %v644 = vadd.f32 0.0, %v643
    %v645 = vpop.f32.mrb[0].mxu0
    %646 = vmatprep.mubr.bf16.mxu0 0
    %647 = vmatmul.mubr.bf16.gmra.mrb[0].mxu0 %v598
    %v648 = vpop.f32.mrb[0].mxu0
    %v649 = vadd.f32 0.0, %v648
    %v650 = vpop.f32.mrb[0].mxu0
    %v651 = vpop.f32.mrb[0].mxu0
    %v652 = vadd.f32 0.0, %v651
    %v653 = vpop.f32.mrb[0].mxu0
    %654 = vdwg.mxu0
    %v655 = vmul.f32 %v641, 0.35355338
    %v656 = vmul.f32 %v644, 0.35355338
    %v657 = vmul.f32 %v649, 0.35355338
    %v658 = vmul.f32 %v652, 0.35355338
    %v659 = vsel %vm183, %v655, -1e+30
    %v660 = vsel %vm184, %v656, -1e+30
    %v661 = vsel %vm185, %v657, -1e+30
    %v662 = vsel %vm186, %v658, -1e+30
    %v663 = vsel %vm27, %v659, -inf
    %664 = vmax.xlane.f32.xlu0 %v663
    %v665 = vpop.xlane.xlu0 %664
    %v666 = vsel %vm27, %v660, -inf
    %667 = vmax.xlane.f32.xlu0 %v666
    %v668 = vpop.xlane.xlu0 %667
    %v669 = vsel %vm27, %v661, -inf
    %670 = vmax.xlane.f32.xlu0 %v669
    %v671 = vpop.xlane.xlu0 %670
    %v672 = vsel %vm27, %v662, -inf
    %673 = vmax.xlane.f32.xlu0 %v672
    %v674 = vpop.xlane.xlu0 %673
    %v675 = vsub.f32 %v659, %v665
    %v676 = vsub.f32 %v660, %v668
    %v677 = vsub.f32 %v661, %v671
    %v678 = vsub.f32 %v662, %v674
    %v679 = vmul.f32 %v675, 1.442695
    %v680 = vpow.pop %v679
    %v681 = vmul.f32 %v676, 1.442695
    %v682 = vpow.pop %v681
    %v683 = vmul.f32 %v677, 1.442695
    %v684 = vpow.pop %v683
    %v685 = vmul.f32 %v678, 1.442695
    %v686 = vpow.pop %v685
    %v687 = vsel %vm27, %v680, 0.0
    %688 = vadd.xlane.f32.xlu0 %v687
    %v689 = vpop.xlane.xlu0 %688
    %v690 = vsel %vm27, %v682, 0.0
    %691 = vadd.xlane.f32.xlu0 %v690
    %v692 = vpop.xlane.xlu0 %691
    %v693 = vsel %vm27, %v684, 0.0
    %694 = vadd.xlane.f32.xlu0 %v693
    %v695 = vpop.xlane.xlu0 %694
    %v696 = vsel %vm27, %v686, 0.0
    %697 = vadd.xlane.f32.xlu0 %v696
    %v698 = vpop.xlane.xlu0 %697
    %v699 = vrcp.pop %v689
    %v700 = vrcp.pop %v692
    %v701 = vrcp.pop %v695
    %v702 = vrcp.pop %v698
    %v703 = vmul.f32 %v680, %v699
    %v704 = vmul.f32 %v682, %v700
    %v705 = vmul.f32 %v684, %v701
    %v706 = vmul.f32 %v686, %v702
    %vm707 = vcmp.ge.s32.totalorder %v174, 16
    %vm708 = vcmp.lt.s32.totalorder %v174, 24
    %vm709 = vmand %vm707, %vm708
    %vm710 = vmpackc.low %vm709, %vm709
    %v711 = vsel %vm710, 65537, 0
    %v712 = vlaneseq
    %v713 = vshrl.u32 %v712, 7
    %v714 = vsub.s32 0, %v713
    %v715 = vrot.slane %v711, %v714
    %716 = vrot.lane.b32.xlu0 %v715, 64
    %v717 = vpop.permute.xlu0 %716
    %vm718 = vcmp.ne.s16.totalorder %v717, 0
    %v719 = vsel %vm718, %v166, 0
    %v720 = vsel %vm718, %v167, 0
    %v721 = vpack.c.bf16 %v704, %v703
    %v722 = vpack.c.bf16 %v706, %v705
    %725 = vrot.lane.b32.xlu0 %v719, 64
    %v726 = vpop.permute.xlu0 %725
    %727 = vrot.lane.b32.xlu0 %v720, 64
    %v728 = vpop.permute.xlu0 %727
    %v732 = vsel %vm27, %v721, 0
    %v735 = vsel %vm27, %v722, 0
    %737 = vmatprep.subr.bf16.mxu0 0
    %738 = vmatpush1.bf16.msra.mxu0 %v726
    %739 = vmatprep.subr.bf16.mxu0 0
    %740 = vmatpush1.bf16.msra.mxu0 %v728
    %741 = vmatprep.subr.bf16.mxu0 0
    %742 = vmatpush1.bf16.msra.mxu0 0
    %743 = vmatprep.subr.bf16.mxu0 0
    %744 = vmatpush1.bf16.msra.mxu0 0
    %745 = vmatprep.subr.bf16.mxu0 0
    %746 = vmatpush1.bf16.msra.mxu0 0
    %747 = vmatprep.subr.bf16.mxu0 0
    %748 = vmatpush1.bf16.msra.mxu0 0
    %749 = vmatprep.subr.bf16.mxu0 0
    %750 = vmatpush1.bf16.msra.mxu0 0
    %751 = vmatprep.subr.bf16.mxu0 0
    %752 = vmatpush1.bf16.msra.mxu0 0
    %753 = vmatprep.subr.bf16.mxu0 0
    %754 = vmatpush1.bf16.msra.mxu0 0
    %755 = vmatprep.subr.bf16.mxu0 0
    %756 = vmatpush1.bf16.msra.mxu0 0
    %757 = vmatprep.subr.bf16.mxu0 0
    %758 = vmatpush1.bf16.msra.mxu0 0
    %759 = vmatprep.subr.bf16.mxu0 0
    %760 = vmatpush1.bf16.msra.mxu0 0
    %761 = vmatprep.subr.bf16.mxu0 0
    %762 = vmatpush1.bf16.msra.mxu0 0
    %763 = vmatprep.subr.bf16.mxu0 0
    %764 = vmatpush1.bf16.msra.mxu0 0
    %765 = vmatprep.subr.bf16.mxu0 0
    %766 = vmatpush1.bf16.msra.mxu0 0
    %767 = vmatprep.subr.bf16.mxu0 0
    %768 = vmatpush1.bf16.msra.mxu0 0
    %769 = vmatprep.mubr.bf16.mxu0 0
    %770 = vmatmul.mubr.bf16.gmra.mrb[0].mxu0 %v732
    %v771 = vpop.f32.mrb[0].mxu0
    %v772 = vadd.f32 0.0, %v771
    %v773 = vpop.f32.mrb[0].mxu0
    %v774 = vpop.f32.mrb[0].mxu0
    %v775 = vadd.f32 0.0, %v774
    %v776 = vpop.f32.mrb[0].mxu0
    %777 = vmatprep.mubr.bf16.mxu0 0
    %778 = vmatmul.mubr.bf16.gmra.mrb[0].mxu0 %v735
    %v779 = vpop.f32.mrb[0].mxu0
    %v780 = vadd.f32 0.0, %v779
    %v781 = vpop.f32.mrb[0].mxu0
    %v782 = vpop.f32.mrb[0].mxu0
    %v783 = vadd.f32 0.0, %v782
    %v784 = vpop.f32.mrb[0].mxu0
    %785 = vdwg.mxu0
    %v786 = vadd.f32 %v572, %v772
    %v787 = vadd.f32 %v575, %v775
    %v788 = vadd.f32 %v580, %v780
    %v789 = vadd.f32 %v583, %v783
    %790 = vrot.lane.b32.xlu0 %v166, 104
    %v791 = vpop.permute.xlu0 %790
    %792 = vrot.lane.b32.xlu0 %v167, 104
    %v793 = vpop.permute.xlu0 %792
    %794 = vrot.lane.b32.xlu0 %v166, 72
    %v795 = vpop.permute.xlu0 %794
    %796 = vrot.lane.b32.xlu0 %v167, 72
    %v797 = vpop.permute.xlu0 %796
    %v799 = vsel %vm193, %v791, 0
    %v802 = vsel %vm193, %v793, 0
    %v805 = vsel %vm193, %v795, 0
    %v808 = vsel %vm193, %v797, 0
    %810 = vmatprep.subr.bf16.mxu0 0
    %811 = vmatpush1.bf16.xpose.msra.mxu0 %v805
    %812 = vmatprep.subr.bf16.mxu0 0
    %813 = vmatpush1.bf16.xpose.msra.mxu0 %v808
    %814 = vmatprep.subr.bf16.mxu0 0
    %815 = vmatpush1.bf16.xpose.msra.mxu0 0
    %816 = vmatprep.subr.bf16.mxu0 0
    %817 = vmatpush1.bf16.xpose.msra.mxu0 0
    %818 = vmatprep.subr.bf16.mxu0 0
    %819 = vmatpush1.bf16.xpose.msra.mxu0 0
    %820 = vmatprep.subr.bf16.mxu0 0
    %821 = vmatpush1.bf16.xpose.msra.mxu0 0
    %822 = vmatprep.subr.bf16.mxu0 0
    %823 = vmatpush1.bf16.xpose.msra.mxu0 0
    %824 = vmatprep.subr.bf16.mxu0 0
    %825 = vmatpush1.bf16.xpose.msra.mxu0 0
    %826 = vmatprep.subr.bf16.mxu0 0
    %827 = vmatpush1.bf16.xpose.msra.mxu0 0
    %828 = vmatprep.subr.bf16.mxu0 0
    %829 = vmatpush1.bf16.xpose.msra.mxu0 0
    %830 = vmatprep.subr.bf16.mxu0 0
    %831 = vmatpush1.bf16.xpose.msra.mxu0 0
    %832 = vmatprep.subr.bf16.mxu0 0
    %833 = vmatpush1.bf16.xpose.msra.mxu0 0
    %834 = vmatprep.subr.bf16.mxu0 0
    %835 = vmatpush1.bf16.xpose.msra.mxu0 0
    %836 = vmatprep.subr.bf16.mxu0 0
    %837 = vmatpush1.bf16.xpose.msra.mxu0 0
    %838 = vmatprep.subr.bf16.mxu0 0
    %839 = vmatpush1.bf16.xpose.msra.mxu0 0
    %840 = vmatprep.subr.bf16.mxu0 0
    %841 = vmatpush1.bf16.xpose.msra.mxu0 0
    %842 = vmatprep.mubr.bf16.mxu0 0
    %843 = vmatmul.mubr.bf16.gmra.mrb[0].mxu0 %v799
    %v844 = vpop.f32.mrb[0].mxu0
    %v845 = vadd.f32 0.0, %v844
    %v846 = vpop.f32.mrb[0].mxu0
    %v847 = vpop.f32.mrb[0].mxu0
    %v848 = vadd.f32 0.0, %v847
    %v849 = vpop.f32.mrb[0].mxu0
    %850 = vmatprep.mubr.bf16.mxu0 0
    %851 = vmatmul.mubr.bf16.gmra.mrb[0].mxu0 %v802
    %v852 = vpop.f32.mrb[0].mxu0
    %v853 = vadd.f32 0.0, %v852
    %v854 = vpop.f32.mrb[0].mxu0
    %v855 = vpop.f32.mrb[0].mxu0
    %v856 = vadd.f32 0.0, %v855
    %v857 = vpop.f32.mrb[0].mxu0
    %858 = vdwg.mxu0
    %v859 = vmul.f32 %v845, 0.35355338
    %v860 = vmul.f32 %v848, 0.35355338
    %v861 = vmul.f32 %v853, 0.35355338
    %v862 = vmul.f32 %v856, 0.35355338
    %v863 = vsel %vm183, %v859, -1e+30
    %v864 = vsel %vm184, %v860, -1e+30
    %v865 = vsel %vm185, %v861, -1e+30
    %v866 = vsel %vm186, %v862, -1e+30
    %v867 = vsel %vm27, %v863, -inf
    %868 = vmax.xlane.f32.xlu0 %v867
    %v869 = vpop.xlane.xlu0 %868
    %v870 = vsel %vm27, %v864, -inf
    %871 = vmax.xlane.f32.xlu0 %v870
    %v872 = vpop.xlane.xlu0 %871
    %v873 = vsel %vm27, %v865, -inf
    %874 = vmax.xlane.f32.xlu0 %v873
    %v875 = vpop.xlane.xlu0 %874
    %v876 = vsel %vm27, %v866, -inf
    %877 = vmax.xlane.f32.xlu0 %v876
    %v878 = vpop.xlane.xlu0 %877
    %v879 = vsub.f32 %v863, %v869
    %v880 = vsub.f32 %v864, %v872
    %v881 = vsub.f32 %v865, %v875
    %v882 = vsub.f32 %v866, %v878
    %v883 = vmul.f32 %v879, 1.442695
    %v884 = vpow.pop %v883
    %v885 = vmul.f32 %v880, 1.442695
    %v886 = vpow.pop %v885
    %v887 = vmul.f32 %v881, 1.442695
    %v888 = vpow.pop %v887
    %v889 = vmul.f32 %v882, 1.442695
    %v890 = vpow.pop %v889
    %v891 = vsel %vm27, %v884, 0.0
    %892 = vadd.xlane.f32.xlu0 %v891
    %v893 = vpop.xlane.xlu0 %892
    %v894 = vsel %vm27, %v886, 0.0
    %895 = vadd.xlane.f32.xlu0 %v894
    %v896 = vpop.xlane.xlu0 %895
    %v897 = vsel %vm27, %v888, 0.0
    %898 = vadd.xlane.f32.xlu0 %v897
    %v899 = vpop.xlane.xlu0 %898
    %v900 = vsel %vm27, %v890, 0.0
    %901 = vadd.xlane.f32.xlu0 %v900
    %v902 = vpop.xlane.xlu0 %901
    %v903 = vrcp.pop %v893
    %v904 = vrcp.pop %v896
    %v905 = vrcp.pop %v899
    %v906 = vrcp.pop %v902
    %v907 = vmul.f32 %v884, %v903
    %v908 = vmul.f32 %v886, %v904
    %v909 = vmul.f32 %v888, %v905
    %v910 = vmul.f32 %v890, %v906
    %vm911 = vcmp.ge.s32.totalorder %v174, 24
    %vm912 = vcmp.lt.s32.totalorder %v174, 32
    %vm913 = vmand %vm911, %vm912
    %vm914 = vmpackc.low %vm913, %vm913
    %v915 = vsel %vm914, 65537, 0
    %v916 = vlaneseq
    %v917 = vshrl.u32 %v916, 7
    %v918 = vsub.s32 0, %v917
    %v919 = vrot.slane %v915, %v918
    %920 = vrot.lane.b32.xlu0 %v919, 64
    %v921 = vpop.permute.xlu0 %920
    %vm922 = vcmp.ne.s16.totalorder %v921, 0
    %v923 = vsel %vm922, %v166, 0
    %v924 = vsel %vm922, %v167, 0
    %v925 = vpack.c.bf16 %v908, %v907
    %v926 = vpack.c.bf16 %v910, %v909
    %929 = vrot.lane.b32.xlu0 %v923, 64
    %v930 = vpop.permute.xlu0 %929
    %931 = vrot.lane.b32.xlu0 %v924, 64
    %v932 = vpop.permute.xlu0 %931
    %v936 = vsel %vm27, %v925, 0
    %v939 = vsel %vm27, %v926, 0
    %941 = vmatprep.subr.bf16.mxu0 0
    %942 = vmatpush1.bf16.msra.mxu0 %v930
    %943 = vmatprep.subr.bf16.mxu0 0
    %944 = vmatpush1.bf16.msra.mxu0 %v932
    %945 = vmatprep.subr.bf16.mxu0 0
    %946 = vmatpush1.bf16.msra.mxu0 0
    %947 = vmatprep.subr.bf16.mxu0 0
    %948 = vmatpush1.bf16.msra.mxu0 0
    %949 = vmatprep.subr.bf16.mxu0 0
    %950 = vmatpush1.bf16.msra.mxu0 0
    %951 = vmatprep.subr.bf16.mxu0 0
    %952 = vmatpush1.bf16.msra.mxu0 0
    %953 = vmatprep.subr.bf16.mxu0 0
    %954 = vmatpush1.bf16.msra.mxu0 0
    %955 = vmatprep.subr.bf16.mxu0 0
    %956 = vmatpush1.bf16.msra.mxu0 0
    %957 = vmatprep.subr.bf16.mxu0 0
    %958 = vmatpush1.bf16.msra.mxu0 0
    %959 = vmatprep.subr.bf16.mxu0 0
    %960 = vmatpush1.bf16.msra.mxu0 0
    %961 = vmatprep.subr.bf16.mxu0 0
    %962 = vmatpush1.bf16.msra.mxu0 0
    %963 = vmatprep.subr.bf16.mxu0 0
    %964 = vmatpush1.bf16.msra.mxu0 0
    %965 = vmatprep.subr.bf16.mxu0 0
    %966 = vmatpush1.bf16.msra.mxu0 0
    %967 = vmatprep.subr.bf16.mxu0 0
    %968 = vmatpush1.bf16.msra.mxu0 0
    %969 = vmatprep.subr.bf16.mxu0 0
    %970 = vmatpush1.bf16.msra.mxu0 0
    %971 = vmatprep.subr.bf16.mxu0 0
    %972 = vmatpush1.bf16.msra.mxu0 0
    %973 = vmatprep.mubr.bf16.mxu0 0
    %974 = vmatmul.mubr.bf16.gmra.mrb[0].mxu0 %v936
    %v975 = vpop.f32.mrb[0].mxu0
    %v976 = vadd.f32 0.0, %v975
    %v977 = vpop.f32.mrb[0].mxu0
    %v978 = vpop.f32.mrb[0].mxu0
    %v979 = vadd.f32 0.0, %v978
    %v980 = vpop.f32.mrb[0].mxu0
    %981 = vmatprep.mubr.bf16.mxu0 0
    %982 = vmatmul.mubr.bf16.gmra.mrb[0].mxu0 %v939
    %v983 = vpop.f32.mrb[0].mxu0
    %v984 = vadd.f32 0.0, %v983
    %v985 = vpop.f32.mrb[0].mxu0
    %v986 = vpop.f32.mrb[0].mxu0
    %v987 = vadd.f32 0.0, %v986
    %v988 = vpop.f32.mrb[0].mxu0
    %989 = vdwg.mxu0
    %v990 = vadd.f32 %v786, %v976
    %v991 = vadd.f32 %v787, %v979
    %v992 = vadd.f32 %v788, %v984
    %v993 = vadd.f32 %v789, %v987
    %v994 = vadd.f32 %v93, %v990
    %v995 = vadd.f32 %v94, %v991
    %v996 = vadd.f32 %v95, %v992
    %v997 = vadd.f32 %v96, %v993
    %v998 = vsel %vm27, %v994, 0.0
    %999 = vadd.xlane.f32.xlu0 %v998
    %v1000 = vpop.xlane.xlu0 %999
    %v1001 = vsel %vm27, %v995, 0.0
    %1002 = vadd.xlane.f32.xlu0 %v1001
    %v1003 = vpop.xlane.xlu0 %1002
    %v1004 = vsel %vm27, %v996, 0.0
    %1005 = vadd.xlane.f32.xlu0 %v1004
    %v1006 = vpop.xlane.xlu0 %1005
    %v1007 = vsel %vm27, %v997, 0.0
    %1008 = vadd.xlane.f32.xlu0 %v1007
    %v1009 = vpop.xlane.xlu0 %1008
    %v1010 = vmul.f32 %v1000, %v40
    %v1011 = vmul.f32 %v1003, %v40
    %v1012 = vmul.f32 %v1006, %v40
    %v1013 = vmul.f32 %v1009, %v40
    %v1014 = vsub.f32 %v994, %v1010
    %v1015 = vsub.f32 %v995, %v1011
    %v1016 = vsub.f32 %v996, %v1012
    %v1017 = vsub.f32 %v997, %v1013
    %v1018 = vmul.f32 %v1014, %v1014
    %v1019 = vmul.f32 %v1015, %v1015
    %v1020 = vmul.f32 %v1016, %v1016
    %v1021 = vmul.f32 %v1017, %v1017
    %v1022 = vsel %vm27, %v1018, 0.0
    %1023 = vadd.xlane.f32.xlu0 %v1022
    %v1024 = vpop.xlane.xlu0 %1023
    %v1025 = vsel %vm27, %v1019, 0.0
    %1026 = vadd.xlane.f32.xlu0 %v1025
    %v1027 = vpop.xlane.xlu0 %1026
    %v1028 = vsel %vm27, %v1020, 0.0
    %1029 = vadd.xlane.f32.xlu0 %v1028
    %v1030 = vpop.xlane.xlu0 %1029
    %v1031 = vsel %vm27, %v1021, 0.0
    %1032 = vadd.xlane.f32.xlu0 %v1031
    %v1033 = vpop.xlane.xlu0 %1032
    %v1034 = vmul.f32 %v1024, %v40
    %v1035 = vmul.f32 %v1027, %v40
    %v1036 = vmul.f32 %v1030, %v40
    %v1037 = vmul.f32 %v1033, %v40
    %v1038 = vadd.f32 %v1034, 1e-05
    %v1039 = vadd.f32 %v1035, 1e-05
    %v1040 = vadd.f32 %v1036, 1e-05
    %v1041 = vadd.f32 %v1037, 1e-05
    %v1042 = vrsqrt.pop %v1038
    %v1043 = vrsqrt.pop %v1039
    %v1044 = vrsqrt.pop %v1040
    %v1045 = vrsqrt.pop %v1041
    %v1046 = vmul.f32 %v1014, %v1042
    %v1047 = vmul.f32 %v1015, %v1043
    %v1048 = vmul.f32 %v1016, %v1044
    %v1049 = vmul.f32 %v1017, %v1045
    %v1050 = vlaneseq
    %v1051 = vshrl.u32 %v1050, 7
    %v1052 = vsub.s32 2, %v1051
    %v1053 = vrot.slane %v26, %v1052
    %v1054 = vmul.f32 %v1046, %v1053
    %v1055 = vmul.f32 %v1047, %v1053
    %v1056 = vmul.f32 %v1048, %v1053
    %v1057 = vmul.f32 %v1049, %v1053
    %v1058 = vlaneseq
    %v1059 = vshrl.u32 %v1058, 7
    %v1060 = vsub.s32 3, %v1059
    %v1061 = vrot.slane %v26, %v1060
    %v1062 = vadd.f32 %v1054, %v1061
    %v1063 = vadd.f32 %v1055, %v1061
    %v1064 = vadd.f32 %v1056, %v1061
    %v1065 = vadd.f32 %v1057, %v1061
    %v1066 = vpack.c.bf16 %v1063, %v1062
    %v1067 = vpack.c.bf16 %v1065, %v1064
    %v1068 = vlaneseq
    %v1069 = vshrl.u32 %v1068, 7
    %v1070 = vsub.s32 4, %v1069
    %v1071 = vrot.slane %v26, %v1070
    %1072 = vrot.lane.b32.xlu0 %v107, 32
    %v1073 = vpop.permute.xlu0 %1072
    %1074 = vrot.lane.b32.xlu0 %v108, 32
    %v1075 = vpop.permute.xlu0 %1074
    %v1079 = vsel %vm27, %v1066, 0
    %v1082 = vsel %vm27, %v1067, 0
    %1084 = vmatprep.subr.bf16.mxu0 0
    %1085 = vmatpush1.bf16.msra.mxu0 %v1073
    %1086 = vmatprep.subr.bf16.mxu0 0
    %1087 = vmatpush1.bf16.msra.mxu0 %v1075
    %1088 = vmatprep.subr.bf16.mxu0 0
    %1089 = vmatpush1.bf16.msra.mxu0 0
    %1090 = vmatprep.subr.bf16.mxu0 0
    %1091 = vmatpush1.bf16.msra.mxu0 0
    %1092 = vmatprep.subr.bf16.mxu0 0
    %1093 = vmatpush1.bf16.msra.mxu0 0
    %1094 = vmatprep.subr.bf16.mxu0 0
    %1095 = vmatpush1.bf16.msra.mxu0 0
    %1096 = vmatprep.subr.bf16.mxu0 0
    %1097 = vmatpush1.bf16.msra.mxu0 0
    %1098 = vmatprep.subr.bf16.mxu0 0
    %1099 = vmatpush1.bf16.msra.mxu0 0
    %1100 = vmatprep.subr.bf16.mxu0 0
    %1101 = vmatpush1.bf16.msra.mxu0 0
    %1102 = vmatprep.subr.bf16.mxu0 0
    %1103 = vmatpush1.bf16.msra.mxu0 0
    %1104 = vmatprep.subr.bf16.mxu0 0
    %1105 = vmatpush1.bf16.msra.mxu0 0
    %1106 = vmatprep.subr.bf16.mxu0 0
    %1107 = vmatpush1.bf16.msra.mxu0 0
    %1108 = vmatprep.subr.bf16.mxu0 0
    %1109 = vmatpush1.bf16.msra.mxu0 0
    %1110 = vmatprep.subr.bf16.mxu0 0
    %1111 = vmatpush1.bf16.msra.mxu0 0
    %1112 = vmatprep.subr.bf16.mxu0 0
    %1113 = vmatpush1.bf16.msra.mxu0 0
    %1114 = vmatprep.subr.bf16.mxu0 0
    %1115 = vmatpush1.bf16.msra.mxu0 0
    %1116 = vmatprep.mubr.bf16.mxu0 0
    %1117 = vmatmul.mubr.bf16.gmra.mrb[0].mxu0 %v1079
    %v1118 = vpop.f32.mrb[0].mxu0
    %v1119 = vadd.f32 %v1071, %v1118
    %v1120 = vpop.f32.mrb[0].mxu0
    %v1121 = vpop.f32.mrb[0].mxu0
    %v1122 = vadd.f32 %v1071, %v1121
    %v1123 = vpop.f32.mrb[0].mxu0
    %1124 = vmatprep.mubr.bf16.mxu0 0
    %1125 = vmatmul.mubr.bf16.gmra.mrb[0].mxu0 %v1082
    %v1126 = vpop.f32.mrb[0].mxu0
    %v1127 = vadd.f32 %v1071, %v1126
    %v1128 = vpop.f32.mrb[0].mxu0
    %v1129 = vpop.f32.mrb[0].mxu0
    %v1130 = vadd.f32 %v1071, %v1129
    %v1131 = vpop.f32.mrb[0].mxu0
    %1132 = vdwg.mxu0
    %v1133 = vmax.f32 %v1119, 0.0
    %v1134 = vmax.f32 %v1122, 0.0
    %v1135 = vmax.f32 %v1127, 0.0
    %v1136 = vmax.f32 %v1130, 0.0
    %v1137 = vpack.c.bf16 %v1134, %v1133
    %v1138 = vpack.c.bf16 %v1136, %v1135
    %v1139 = vlaneseq
    %v1140 = vshrl.u32 %v1139, 7
    %v1141 = vsub.s32 5, %v1140
    %v1142 = vrot.slane %v26, %v1141
    %v1143 = vunpack.c.h.b16 %v22
    %v1144 = vunpack.c.h.b16 %v23
    %v1145 = vunpack.c.h.b16 %v24
    %v1146 = vunpack.c.h.b16 %v25
    %v1147 = vpack.c.b16 %v1144, %v1143
    %v1148 = vpack.c.b16 %v1146, %v1145
    %v1152 = vsel %vm27, %v1137, 0
    %v1155 = vsel %vm27, %v1138, 0
    %1157 = vmatprep.subr.bf16.mxu0 0
    %1158 = vmatpush1.bf16.msra.mxu0 %v1147
    %1159 = vmatprep.subr.bf16.mxu0 0
    %1160 = vmatpush1.bf16.msra.mxu0 %v1148
    %1161 = vmatprep.subr.bf16.mxu0 0
    %1162 = vmatpush1.bf16.msra.mxu0 0
    %1163 = vmatprep.subr.bf16.mxu0 0
    %1164 = vmatpush1.bf16.msra.mxu0 0
    %1165 = vmatprep.subr.bf16.mxu0 0
    %1166 = vmatpush1.bf16.msra.mxu0 0
    %1167 = vmatprep.subr.bf16.mxu0 0
    %1168 = vmatpush1.bf16.msra.mxu0 0
    %1169 = vmatprep.subr.bf16.mxu0 0
    %1170 = vmatpush1.bf16.msra.mxu0 0
    %1171 = vmatprep.subr.bf16.mxu0 0
    %1172 = vmatpush1.bf16.msra.mxu0 0
    %1173 = vmatprep.subr.bf16.mxu0 0
    %1174 = vmatpush1.bf16.msra.mxu0 0
    %1175 = vmatprep.subr.bf16.mxu0 0
    %1176 = vmatpush1.bf16.msra.mxu0 0
    %1177 = vmatprep.subr.bf16.mxu0 0
    %1178 = vmatpush1.bf16.msra.mxu0 0
    %1179 = vmatprep.subr.bf16.mxu0 0
    %1180 = vmatpush1.bf16.msra.mxu0 0
    %1181 = vmatprep.subr.bf16.mxu0 0
    %1182 = vmatpush1.bf16.msra.mxu0 0
    %1183 = vmatprep.subr.bf16.mxu0 0
    %1184 = vmatpush1.bf16.msra.mxu0 0
    %1185 = vmatprep.subr.bf16.mxu0 0
    %1186 = vmatpush1.bf16.msra.mxu0 0
    %1187 = vmatprep.subr.bf16.mxu0 0
    %1188 = vmatpush1.bf16.msra.mxu0 0
    %1189 = vmatprep.mubr.bf16.mxu0 0
    %1190 = vmatmul.mubr.bf16.gmra.mrb[0].mxu0 %v1152
    %v1191 = vpop.f32.mrb[0].mxu0
    %v1192 = vadd.f32 %v1142, %v1191
    %v1193 = vpop.f32.mrb[0].mxu0
    %v1194 = vpop.f32.mrb[0].mxu0
    %v1195 = vadd.f32 %v1142, %v1194
    %v1196 = vpop.f32.mrb[0].mxu0
    %1197 = vmatprep.mubr.bf16.mxu0 0
    %1198 = vmatmul.mubr.bf16.gmra.mrb[0].mxu0 %v1155
    %v1199 = vpop.f32.mrb[0].mxu0
    %v1200 = vadd.f32 %v1142, %v1199
    %v1201 = vpop.f32.mrb[0].mxu0
    %v1202 = vpop.f32.mrb[0].mxu0
    %v1203 = vadd.f32 %v1142, %v1202
    %v1204 = vpop.f32.mrb[0].mxu0
    %1205 = vdwg.mxu0
    %v1206 = vadd.f32 %v1062, %v1192
    %v1207 = vadd.f32 %v1063, %v1195
    %v1208 = vadd.f32 %v1064, %v1200
    %v1209 = vadd.f32 %v1065, %v1203
    %1210 = vst.msk [vmem:[#allocation2] sm:$0xff] %vm27, %v1206
    %1211 = vst.msk [vmem:[#allocation2 + $0x8] sm:$0xff] %vm27, %v1207
    %1212 = vst.msk [vmem:[#allocation2 + $0x10] sm:$0xff] %vm27, %v1208
    %1213 = vst.msk [vmem:[#allocation2 + $0x18] sm:$0xff] %vm27, %v1209
    // Predicated region
    $region14: #{sattention_forward.1} parent=1 // pred_check
      _
    $region15: #{sattention_forward.1} parent=1 // pred_check_branch
      %1215 = sbr.rel (0) target = $region17
    $region16: #{sattention_forward.1} parent=1 // pred_region
      %s1217 = ssub.s32 512, 512
      %1218 = vsyncadd [#allocation3], %s1217
      %s1219 = sshll.u32 [#allocation2], 4
      %s1220 = int_to_ptr.vmem [resolvable:$true] %s1219
      %1225 = dma.vmem_to_hbm [thread:$0]  %s1220, 512, %s3, [#allocation3], 128, 128, 8
    $region17: #{sattention_forward.1} parent=1 // pred_fallthru
      _
    // Predicated region
    $region18: #{sattention_forward.1} parent=1 // pred_check
      _
    $region19: #{sattention_forward.1} parent=1 // pred_check_branch
      %1227 = sbr.rel (0) target = $region21
    $region20: #{sattention_forward.1} parent=1 // pred_region
      %1228 = dma.done [#allocation3], 512
    $region21: #{sattention_forward.1} parent=1 // pred_fallthru
      _
    %1229 = vsyncpa [#allocation3], 1

</llo_original>
